<compile_context>
chip_gen: v7x
topology: tpu7x:2x2x1
jax: 0.10.0
libtpu: 0.0.40
codegen_flags: <defaults>
</compile_context>

<pallas_src>
import jax
import jax.numpy as jnp
from jax.experimental import pallas as pl
from jax.experimental.pallas import tpu as pltpu


def _round_up(x, m):
    return ((x + m - 1) // m) * m


def _vmem_estimate_bytes(CD, hw_tile, mk, in_itemsize, out_itemsize):
    """Per-step VMEM working set (double-buffered blocks + scratch + big temps)."""
    out_blocks = 2 * CD * hw_tile * out_itemsize        # pipelined output block
    acc = CD * hw_tile * 4                              # f32 accumulator scratch
    lhs = 2 * CD * mk * in_itemsize                     # pipelined LHS chunk
    key = 2 * mk * 128 * 4                              # (mk, 1) int32 pads to 128 lanes
    scatter = mk * hw_tile * (4 + in_itemsize)          # iota + one-hot temps
    return out_blocks + acc + lhs + key + scatter


def _pick_tiles(HW_pad, M, CD, in_itemsize, out_itemsize, budget_bytes=10 << 20):
    """Largest 128-multiple spatial tile dividing HW_pad that keeps the working set
    under `budget_bytes` (conservative for v7x's 64 MiB VMEM); M chunk <= 512."""
    mk = min(512, _round_up(max(M, 1), 128))
    hw_tile = 128
    for cand in range(128, HW_pad + 1, 128):
        if HW_pad % cand:
            continue
        if _vmem_estimate_bytes(CD, cand, mk, in_itemsize, out_itemsize) <= budget_bytes:
            hw_tile = max(hw_tile, cand)
    return hw_tile, mk


def height_compression_fused(features, indices, dense_shape, *,
                             relaxed_matmul_precision=False,
                             hw_tile=None, m_chunk=None):
    """Fused spconv .dense() + view(N, C*D, H, W).

    features:    (M, C) float32/bfloat16 voxel features
    indices:     (M, 4) int32 as (batch, d, h, w)
    dense_shape: (N, C, D, H, W)
    Returns (N, C*D, H, W) in the feature dtype.
    """
    N, C, D, H, W = dense_shape
    M, Cf = features.shape
    assert Cf == C, (Cf, C)
    CD = C * D
    HW = H * W
    HW_pad = _round_up(HW, 128)                       # unmasked (lane-dense) output stores
    assert N * HW_pad < 2 ** 31, "combined int32 (batch, spatial) key would overflow"

    in_dt = features.dtype
    in_itemsize = jnp.dtype(in_dt).itemsize
    auto_hw, auto_mk = _pick_tiles(HW_pad, M, CD, in_itemsize, in_itemsize)
    hw_tile = auto_hw if hw_tile is None else hw_tile
    mk = auto_mk if m_chunk is None else m_chunk
    assert HW_pad % hw_tile == 0 and hw_tile % 128 == 0
    M_pad = _round_up(max(M, 1), mk)
    n_tiles = HW_pad // hw_tile
    n_mchunks = M_pad // mk

    idx = indices.astype(jnp.int32)
    b, d, h, w = idx[:, 0], idx[:, 1], idx[:, 2], idx[:, 3]

    # LHS[(c*D + d), m] = feat[m, c] * (depth_m == d): one cheap wrapper-side op so the
    # kernel's MXU LHS already has C*D rows and no in-kernel sublane relayout is needed.
    depth_onehot = (d[None, :] == jnp.arange(D, dtype=jnp.int32)[:, None]).astype(in_dt)  # (D, M)
    lhs = (features.T[:, None, :] * depth_onehot[None, :, :]).reshape(CD, M)              # (C*D, M)
    lhs = jnp.pad(lhs, ((0, 0), (0, M_pad - M)))                                          # zero pad

    # Combined (batch, spatial) key; padded voxels get -1 so they never match any column.
    key = b * HW_pad + h * W + w                                                           # (M,)
    key = jnp.pad(key, (0, M_pad - M), constant_values=-1).reshape(M_pad, 1)               # (M_pad, 1)

    if in_dt == jnp.float32 and not relaxed_matmul_precision:
        # Bit-exact .dense() copy for f32 features (Mosaic has no per-operand precision).
        precision = jax.lax.Precision.HIGHEST
    else:
        # Single MXU pass; exact for bf16 features since the one-hot operand is exact.
        precision = jax.lax.Precision.DEFAULT

    def kernel(lhs_ref, key_ref, out_ref, acc_ref):
        n = pl.program_id(0)          # batch
        t = pl.program_id(1)          # spatial tile
        k = pl.program_id(2)          # m-chunk (reduction)

        @pl.when(k == 0)
        def _init():
            acc_ref[...] = jnp.zeros_like(acc_ref)

        # One-hot scatter for this (batch, tile): 1 compare + 1 cast on the big
        # (mk, hw_tile) array; offset arithmetic stays on the (mk, 1) column.
        local = key_ref[...] - (n * HW_pad + t * hw_tile)                    # (mk, 1) int32
        q = jax.lax.broadcasted_iota(jnp.int32, (mk, hw_tile), 1)            # (mk, hw_tile)
        scatter = (local == q).astype(lhs_ref.dtype)                         # (mk, hw_tile)

        acc_ref[...] += jnp.dot(lhs_ref[...], scatter,
                                preferred_element_type=jnp.float32,
                                precision=precision)                         # (C*D, hw_tile)

        @pl.when(k == pl.num_programs(2) - 1)
        def _finalize():
            # Single contiguous, fully lane/sublane-dense store of the whole block.
            out_ref[...] = acc_ref[...].astype(out_ref.dtype)

    est = _vmem_estimate_bytes(CD, hw_tile, mk, in_itemsize, in_itemsize)
    vmem_limit = int(min(max(3 * est, 32 << 20), 48 << 20))   # explicit, generation-safe

    out = pl.pallas_call(
        kernel,
        out_shape=jax.ShapeDtypeStruct((N, CD, HW_pad), in_dt),
        grid=(N, n_tiles, n_mchunks),
        in_specs=[
            pl.BlockSpec((CD, mk), lambda n, t, k: (0, k)),    # LHS chunk (C*D, mk)
            pl.BlockSpec((mk, 1), lambda n, t, k: (k, 0)),     # combined key chunk
        ],
        out_specs=pl.BlockSpec((None, CD, hw_tile), lambda n, t, k: (n, 0, t)),
        scratch_shapes=[pltpu.VMEM((CD, hw_tile), jnp.float32)],
        compiler_params=pltpu.CompilerParams(
            dimension_semantics=("parallel", "parallel", "arbitrary"),
            vmem_limit_bytes=vmem_limit,
        ),
    )(lhs, key)

    if HW_pad != HW:
        out = out[:, :, :HW]
    # (N, C*D, H*W) -> (N, C*D, H, W): free reshape; channel index = c*D + d (torch .view).
    return out.reshape(N, CD, H, W)


class HeightCompressionPallas:
    """Mirror of pcdet HeightCompression; spconv .dense() + channel collapse fused on-chip."""

    def __init__(self, num_bev_features):
        self.num_bev_features = num_bev_features

    def __call__(self, batch_dict):
        features, indices, dense_shape = batch_dict["encoded_spconv_tensor"]
        batch_dict["spatial_features"] = height_compression_fused(
            features, indices, dense_shape
        )
        batch_dict["spatial_features_stride"] = batch_dict["encoded_spconv_tensor_stride"]
        return batch_dict


if __name__ == "__main__":
    # Small shapes: N=2, C=4, D=8, H=W=16  ->  NUM_BEV_FEATURES = C*D = 32
    N, C, D, H, W = 2, 4, 8, 16, 16
    M = 64  # number of active sparse voxels

    key0 = jax.random.PRNGKey(0)
    kf, ki = jax.random.split(key0)
    features = jax.random.normal(kf, (M, C), dtype=jnp.float32)

    # Unique active voxel coordinates (spconv guarantees uniqueness).
    flat = jax.random.choice(ki, N * D * H * W, shape=(M,), replace=False).astype(jnp.int32)
    b = flat // (D * H * W)
    rem = flat % (D * H * W)
    d = rem // (H * W)
    rem2 = rem % (H * W)
    h = rem2 // W
    w = rem2 % W
    indices = jnp.stack([b, d, h, w], axis=1).astype(jnp.int32)

    module = HeightCompressionPallas(num_bev_features=C * D)

    # --- float32 path (bit-exact .dense() + .view semantics) --------------------------
    batch_dict = {
        "encoded_spconv_tensor": (features, indices, (N, C, D, H, W)),
        "encoded_spconv_tensor_stride": 8,
    }
    out = module(batch_dict)
    spatial = jax.block_until_ready(out["spatial_features"])

    dense_ref = jnp.zeros((N, C, D, H, W), jnp.float32).at[b, :, d, h, w].set(features)
    ref = dense_ref.reshape(N, C * D, H, W)

    assert spatial.shape == (N, C * D, H, W), spatial.shape
    assert spatial.dtype == ref.dtype
    assert jnp.allclose(spatial, ref, rtol=1e-5, atol=1e-5), "f32 mismatch vs reference"
    assert out["spatial_features_stride"] == 8

    # --- bf16 path (recommended production path: single-pass MXU, exact for bf16
    #     features since the one-hot scatter operand is exactly representable) ---------
    feats_bf16 = features.astype(jnp.bfloat16)
    spatial_bf16 = jax.block_until_ready(
        height_compression_fused(feats_bf16, indices, (N, C, D, H, W))
    )
    dense_bf16 = jnp.zeros((N, C, D, H, W), jnp.bfloat16).at[b, :, d, h, w].set(feats_bf16)
    ref_bf16 = dense_bf16.reshape(N, C * D, H, W)
    assert spatial_bf16.dtype == jnp.bfloat16
    assert jnp.allclose(spatial_bf16.astype(jnp.float32),
                        ref_bf16.astype(jnp.float32), atol=1e-6), "bf16 mismatch vs reference"

    print("KERNEL_OK")
</pallas_src>

<mosaic_0001>
module attributes {stable_mosaic.version = 11 : i64} {
  func.func @kernel(%arg0: i32, %arg1: i32, %arg2: i32, %arg3: memref<32x128xf32, #tpu.memory_space<vmem>>, %arg4: memref<128x1xi32, #tpu.memory_space<vmem>>, %arg5: memref<1x32x256xf32, #tpu.memory_space<vmem>>, %arg6: memref<32x256xf32, #tpu.memory_space<vmem>>) attributes {dimension_semantics = [#tpu.dimension_semantics<parallel>, #tpu.dimension_semantics<parallel>, #tpu.dimension_semantics<arbitrary>], iteration_bounds = array<i64: 2, 1, 1>, scalar_prefetch = 0 : i64, scratch_operands = 1 : i64, tpu.core_type = #tpu.core_type<tc>, window_params = [{transform_indices = @transform_0, window_bounds = array<i64: 32, 128>}, {transform_indices = @transform_1, window_bounds = array<i64: 128, 1>}, {transform_indices = @transform_2, window_bounds = array<i64: 1, 32, 256>}]} {
    %c0_i32 = arith.constant 0 : i32
    %0 = arith.cmpi eq, %arg2, %c0_i32 : i32
    %1 = arith.extui %0 : i1 to i32
    %c0_i32_0 = arith.constant 0 : i32
    %2 = arith.cmpi ne, %1, %c0_i32_0 : i32
    scf.if %2 {
      %cst_11 = arith.constant 0.000000e+00 : f32
      %22 = vector.broadcast %cst_11 : f32 to vector<32x256xf32>
      %c0_12 = arith.constant 0 : index
      %c0_13 = arith.constant 0 : index
      %23 = vector.load %arg6[%c0_12, %c0_13] : memref<32x256xf32, #tpu.memory_space<vmem>>, vector<32x256xf32>
      tpu.vector_store %arg6[%c0_12, %c0_13], %22 {strides = array<i32>} : memref<32x256xf32, #tpu.memory_space<vmem>>, vector<32x256xf32>,
    } else {
    }
    %c0 = arith.constant 0 : index
    %c0_1 = arith.constant 0 : index
    %3 = vector.load %arg4[%c0, %c0_1] : memref<128x1xi32, #tpu.memory_space<vmem>>, vector<128x1xi32>
    %c256_i32 = arith.constant 256 : i32
    %4 = arith.muli %arg0, %c256_i32 : i32
    %c256_i32_2 = arith.constant 256 : i32
    %5 = arith.muli %arg1, %c256_i32_2 : i32
    %6 = arith.addi %4, %5 : i32
    %7 = vector.broadcast %6 : i32 to vector<128x1xi32>
    %8 = arith.subi %3, %7 : vector<128x1xi32>
    %9 = tpu.iota {dimensions = array<i32: 1>} : vector<128x256xi32>
    %10 = vector.broadcast %8 : vector<128x1xi32> to vector<128x256xi32>
    %11 = arith.cmpi eq, %10, %9 : vector<128x256xi32>
    %12 = arith.extui %11 : vector<128x256xi1> to vector<128x256xi32>
    %13 = arith.sitofp %12 : vector<128x256xi32> to vector<128x256xf32>
    %c0_3 = arith.constant 0 : index
    %c0_4 = arith.constant 0 : index
    %14 = vector.load %arg6[%c0_3, %c0_4] : memref<32x256xf32, #tpu.memory_space<vmem>>, vector<32x256xf32>
    %c0_5 = arith.constant 0 : index
    %c0_6 = arith.constant 0 : index
    %15 = vector.load %arg3[%c0_5, %c0_6] : memref<32x128xf32, #tpu.memory_space<vmem>>, vector<32x128xf32>
    %cst = arith.constant dense<0.000000e+00> : vector<32x256xf32>
    %16 = tpu.matmul %15, %13, %cst {dimension_numbers = #tpu.dot_dimension_numbers<[1], [0], [0], [1], [0, 0, 1, 1], [], []>, precision = #tpu.contract_precision<fp32>} : vector<32x128xf32>, vector<128x256xf32>, vector<32x256xf32> -> vector<32x256xf32>
    %17 = arith.addf %14, %16 : vector<32x256xf32>
    %c0_7 = arith.constant 0 : index
    %c0_8 = arith.constant 0 : index
    %18 = vector.load %arg6[%c0_7, %c0_8] : memref<32x256xf32, #tpu.memory_space<vmem>>, vector<32x256xf32>
    tpu.vector_store %arg6[%c0_7, %c0_8], %17 {strides = array<i32>} : memref<32x256xf32, #tpu.memory_space<vmem>>, vector<32x256xf32>,
    %c0_i32_9 = arith.constant 0 : i32
    %19 = arith.cmpi eq, %arg2, %c0_i32_9 : i32
    %20 = arith.extui %19 : i1 to i32
    %c0_i32_10 = arith.constant 0 : i32
    %21 = arith.cmpi ne, %20, %c0_i32_10 : i32
    scf.if %21 {
      %c0_11 = arith.constant 0 : index
      %c0_12 = arith.constant 0 : index
      %22 = vector.load %arg6[%c0_11, %c0_12] : memref<32x256xf32, #tpu.memory_space<vmem>>, vector<32x256xf32>
      %c0_13 = arith.constant 0 : index
      %c0_14 = arith.constant 0 : index
      %c0_15 = arith.constant 0 : index
      %23 = vector.load %arg5[%c0_13, %c0_14, %c0_15] : memref<1x32x256xf32, #tpu.memory_space<vmem>>, vector<1x32x256xf32>
      %24 = vector.shape_cast %23 : vector<1x32x256xf32> to vector<32x256xf32>
      %25 = vector.shape_cast %22 : vector<32x256xf32> to vector<1x32x256xf32>
      tpu.vector_store %arg5[%c0_13, %c0_14, %c0_15], %25 {strides = array<i32>} : memref<1x32x256xf32, #tpu.memory_space<vmem>>, vector<1x32x256xf32>,
    } else {
    }
    return
  }
  func.func @transform_0(%arg0: i32, %arg1: i32, %arg2: i32) -> (i32, i32) {
    %c0_i32 = arith.constant 0 : i32
    %c0_i32_0 = arith.constant 0 : i32
    return %c0_i32, %arg2 : i32, i32
  }
  func.func @transform_1(%arg0: i32, %arg1: i32, %arg2: i32) -> (i32, i32) {
    %c0_i32 = arith.constant 0 : i32
    %c0_i32_0 = arith.constant 0 : i32
    return %arg2, %c0_i32 : i32, i32
  }
  func.func @transform_2(%arg0: i32, %arg1: i32, %arg2: i32) -> (i32, i32, i32) {
    %c0_i32 = arith.constant 0 : i32
    %c0_i32_0 = arith.constant 0 : i32
    return %arg0, %c0_i32, %arg1 : i32, i32, i32
  }
}

</mosaic_0001>

<llo_original>
// kernel: tpu_custom_call.1
$region0: #{tpu_custom_call.1}
  #allocation0 [shape = 'u32[]', space=smem, size = 0x4, offset = 0x4, fixed_abs, tag = 'smem constant byte address 0x4 - core index']
  #allocation1 [shape = 'u32[144,128]{1,0:T(1,128)}', space=vmem, size = 0x12000, scoped, tag = 'internal scratch']
  #allocation2 [shape = 'f32[32,256]{1,0:T(8,128)}', space=vmem, size = 0x8000, scoped, tag = 'scratch operand']
  %s0 = inlined_call_operand.vmem [shape: f32[32,128], index: 0, kind: input, shape index: {}]
  %s1 = inlined_call_operand.vmem [shape: s32[128,1], index: 1, kind: input, shape index: {}]
  %s2 = inlined_call_operand.hbm [shape: f32[2,32,256], index: 2, kind: output, shape index: {}]
  %s3 = sld [smem:[#allocation0]]
  $region49: #{tpu_custom_call.1} parent=0
    _
  %s5 = ssub.s32 1, %s3
  %s6 = scalar_select 0, %s5, %s3
  $region1: #{tpu_custom_call.1} parent=0
    #allocation3 [shape = 'u8[65536]{0}', space=vmem, size = 0x10000, scoped, tag = 'output window, operand 0']
    #allocation4 [shape = 's32[2]{0}', space=sflag, size = 0x8, scoped, tag = 'scoped memory for tpu_custom_call.1']
    %7 = vsyncpa [#allocation4], 0
    %s8 = scalar_lea.sflag [#allocation4], 1
    %9 = vsyncpa %s8, 0
    loop: start=0, step=1, limit=4
    $region2: #{tpu_custom_call.1} parent=1 // loop_pre_header
      _
    $region3: #{tpu_custom_call.1} parent=1 // loop_header
      %s11 = sphi 0, %s15
      %p12 = scmp.ge.s32.totalorder %s11, 4
      %s18 = sphi 0, %s37
      %s19 = sphi 0, %s33
      %s20 = sphi 0, %s29
      %s21 = sphi 0, %s18
      %s22 = sphi 0, %s19
      %s23 = sphi 0, %s20
      %s24 = sphi 0, %s21
      %s25 = sphi 0, %s22
      %s26 = sphi 0, %s23
      %s40 = sphi 0, %s42
      %s43 = sphi 0, %s40
      %s44 = sphi 0, %s43
      %s60 = sphi 0, %s44
      %s66 = sphi 0, %s68
      %s69 = sphi 0, %s66
      %s70 = sphi 0, %s69
      %s86 = sphi 0, %s70
      %s94 = sphi 0, %s96
      %s97 = sphi 0, %s94
      %s98 = sphi 0, %s97
      %s114 = sphi 0, %s98
    $region4: #{tpu_custom_call.1} parent=1 // loop_header_branch
      %14 = sbr.rel (%p12) target = $region8
    $region5: #{tpu_custom_call.1} parent=1 // loop_body
      %s16 = ssub.s32 %s11, 1
      %s17 = ssub.s32 %s11, 2
      %s27 = sadd.s32 1, %s20
      %p28 = scmp.ge.s32.totalorder %s27, 1
      %s29 = scalar_select %p28, 0, %s27
      %s30 = sadd.s32 1, %s19
      %s31 = scalar_select %p28, %s30, %s19
      %p32 = scmp.ge.s32.totalorder %s31, 1
      %s33 = scalar_select %p32, 0, %s31
      %s34 = sadd.s32 1, %s18
      %s35 = scalar_select %p32, %s34, %s18
      %p36 = scmp.ge.s32.totalorder %s35, 2
      %s37 = scalar_select %p36, 0, %s35
      %s38 = ssub.s32 %s20, %s29
      %p39 = scmp.eq.s32.totalorder %s38, 0
      %s41 = sadd.s32 %s40, 1
      %s42 = scalar_select %p39, %s40, %s41
      %p45 = pneg %p39
      %p46 = scmp.eq.s32.totalorder %s11, 1
      %p47 = por %p45, %p46
      %p48 = scmp.ne.s32.totalorder %s40, %s43
      %p49 = scmp.eq.s32.totalorder %s11, 0
      %p50 = por %p48, %p49
      %p51 = scmp.ne.s32.totalorder %s40, %s43
      %p52 = scmp.eq.s32.totalorder %s16, 1
      %p53 = por %p51, %p52
      %p54 = scmp.ne.s32.totalorder %s43, %s44
      %p55 = scmp.eq.s32.totalorder %s16, 0
      %p56 = por %p54, %p55
      %p57 = scmp.ne.s32.totalorder %s43, %s44
      %p58 = scmp.eq.s32.totalorder %s17, 1
      %p59 = por %p57, %p58
      %p61 = scmp.ne.s32.totalorder %s44, %s60
      %p62 = scmp.eq.s32.totalorder %s17, 0
      %p63 = por %p61, %p62
      %s64 = ssub.s32 %s20, %s29
      %p65 = scmp.eq.s32.totalorder %s64, 0
      %s67 = sadd.s32 %s66, 1
      %s68 = scalar_select %p65, %s66, %s67
      %p71 = pneg %p65
      %p72 = scmp.eq.s32.totalorder %s11, 1
      %p73 = por %p71, %p72
      %p74 = scmp.ne.s32.totalorder %s66, %s69
      %p75 = scmp.eq.s32.totalorder %s11, 0
      %p76 = por %p74, %p75
      %p77 = scmp.ne.s32.totalorder %s66, %s69
      %p78 = scmp.eq.s32.totalorder %s16, 1
      %p79 = por %p77, %p78
      %p80 = scmp.ne.s32.totalorder %s69, %s70
      %p81 = scmp.eq.s32.totalorder %s16, 0
      %p82 = por %p80, %p81
      %p83 = scmp.ne.s32.totalorder %s69, %s70
      %p84 = scmp.eq.s32.totalorder %s17, 1
      %p85 = por %p83, %p84
      %p87 = scmp.ne.s32.totalorder %s70, %s86
      %p88 = scmp.eq.s32.totalorder %s17, 0
      %p89 = por %p87, %p88
      %s90 = ssub.s32 %s18, %s37
      %s91 = ssub.s32 %s19, %s33
      %s92 = sor.u32 %s90, %s91
      %p93 = scmp.eq.s32.totalorder %s92, 0
      %s95 = sadd.s32 %s94, 1
      %s96 = scalar_select %p93, %s94, %s95
      %p99 = pneg %p93
      %p100 = scmp.eq.s32.totalorder %s11, 1
      %p101 = por %p99, %p100
      %p102 = scmp.ne.s32.totalorder %s94, %s97
      %p103 = scmp.eq.s32.totalorder %s11, 0
      %p104 = por %p102, %p103
      %p105 = scmp.ne.s32.totalorder %s94, %s97
      %p106 = scmp.eq.s32.totalorder %s16, 1
      %p107 = por %p105, %p106
      %p108 = scmp.ne.s32.totalorder %s97, %s98
      %p109 = scmp.eq.s32.totalorder %s16, 0
      %p110 = por %p108, %p109
      %p111 = scmp.ne.s32.totalorder %s97, %s98
      %p112 = scmp.eq.s32.totalorder %s17, 1
      %p113 = por %p111, %p112
      %p115 = scmp.ne.s32.totalorder %s98, %s114
      %p116 = scmp.eq.s32.totalorder %s17, 0
      %p117 = por %p115, %p116
      %p118 = scmp.le.s32.totalorder 1, %s11
      %p119 = scmp.lt.s32.totalorder %s11, 3
      %p120 = pnand %p118, %p119
      %p121 = pneg %p120
      // Predicated region
      $region9: #{tpu_custom_call.1} parent=5 // pred_check
        _
      $region10: #{tpu_custom_call.1} parent=5 // pred_check_branch
        %123 = sbr.rel (%p120) target = $region12
      $region11: #{tpu_custom_call.1} parent=5 // pred_region
        %s124 = ssub.s32 %s11, 1
        // Predicated region
        $region13: #{tpu_custom_call.1} parent=11 // pred_check
          %p125 = pneg %p56
        $region14: #{tpu_custom_call.1} parent=11 // pred_check_branch
          %127 = sbr.rel (%p125) target = $region16
        $region15: #{tpu_custom_call.1} parent=11 // pred_region
          %p128 = scmp.lt.s32.totalorder %s23, 0
          %s129 = scalar_select %p128, %s23, 0
          %s130 = smul.addr %s129, 8
          %s131 = scalar_lea.vmem %s0, %s130
        $region16: #{tpu_custom_call.1} parent=11 // pred_fallthru
          _
        // Predicated region
        $region17: #{tpu_custom_call.1} parent=11 // pred_check
          %p132 = pneg %p82
        $region18: #{tpu_custom_call.1} parent=11 // pred_check_branch
          %134 = sbr.rel (%p132) target = $region20
        $region19: #{tpu_custom_call.1} parent=11 // pred_region
          %s135 = smul.u32 16, %s23
          %p136 = scmp.lt.s32.totalorder %s135, 15
          %s137 = scalar_select %p136, %s135, 15
          %s138 = smul.addr %s137, 8
          %s139 = scalar_lea.vmem %s1, %s138
          %s140 = smul.u32 16, %s23
        $region20: #{tpu_custom_call.1} parent=11 // pred_fallthru
          _
      $region12: #{tpu_custom_call.1} parent=5 // pred_fallthru
        _
      %p141 = scmp.lt.s32.totalorder %s11, 2
      // Predicated region
      $region21: #{tpu_custom_call.1} parent=5 // pred_check
        %p142 = pneg %p141
      $region22: #{tpu_custom_call.1} parent=5 // pred_check_branch
        %144 = sbr.rel (%p142) target = $region24
      $region23: #{tpu_custom_call.1} parent=5 // pred_region
        _
      $region24: #{tpu_custom_call.1} parent=5 // pred_fallthru
        _
      %p145 = scmp.le.s32.totalorder 1, %s11
      %p146 = scmp.lt.s32.totalorder %s11, 3
      %p147 = pnand %p145, %p146
      %p148 = pneg %p147
      // Predicated region
      $region25: #{tpu_custom_call.1} parent=5 // pred_check
        _
      $region26: #{tpu_custom_call.1} parent=5 // pred_check_branch
        %150 = sbr.rel (%p147) target = $region28
      $region27: #{tpu_custom_call.1} parent=5 // pred_region
        %s151 = ssub.s32 %s11, 1
        %p152 = scmp.lt.s32.totalorder %s23, 0
        %s153 = scalar_select %p152, %s23, 0
        %s154 = smul.addr %s153, 8
        %s155 = scalar_lea.vmem %s0, %s154
        %p156 = pneg %p56
        %p157 = pneg %p53
        %s158 = smul.u32 16, %s23
        %p159 = scmp.lt.s32.totalorder %s158, 15
        %s160 = scalar_select %p159, %s158, 15
        %s161 = smul.addr %s160, 8
        %s162 = scalar_lea.vmem %s1, %s161
        %p163 = pneg %p82
        %p164 = pneg %p79
        %p165 = pneg %p110
        %p166 = pneg %p107
        %s167 = sand.u32 %s97, 1
        %s168 = scalar_lea.sflag [#allocation4], %s167
        %s169 = sand.u32 %s97, 1
        %s170 = smul.addr %s169, 64
        %s171 = scalar_lea.vmem [#allocation3], %s170
        %p172 = scmp.lt.s32.totalorder %s23, 0
        %s173 = scalar_select %p172, %s23, 0
        %s174 = smul.addr %s173, 8
        %s175 = scalar_lea.vmem %s0, %s174
        %s176 = smul.u32 16, %s23
        %p177 = scmp.lt.s32.totalorder %s176, 15
        %s178 = scalar_select %p177, %s176, 15
        %s179 = smul.addr %s178, 8
        %s180 = scalar_lea.vmem %s1, %s179
        %s181 = smul.u32 16, %s23
        %s182 = smul.u32 2, %s22
        %p183 = scmp.eq.s32.totalorder %s23, 0
        // Predicated region
        $region29: #{tpu_custom_call.1} parent=27 // pred_check
          %p184 = pneg %p183
        $region30: #{tpu_custom_call.1} parent=27 // pred_check_branch
          %186 = sbr.rel (%p184) target = $region32
        $region31: #{tpu_custom_call.1} parent=27 // pred_region
          %187 = vst [vmem:[#allocation2] sm:$0xff] 0.0
          %188 = vst [vmem:[#allocation2 + $0x8] sm:$0xff] 0.0
          %189 = vst [vmem:[#allocation2 + $0x10] sm:$0xff] 0.0
          %190 = vst [vmem:[#allocation2 + $0x18] sm:$0xff] 0.0
          %191 = vst [vmem:[#allocation2 + $0x20] sm:$0xff] 0.0
          %192 = vst [vmem:[#allocation2 + $0x28] sm:$0xff] 0.0
          %193 = vst [vmem:[#allocation2 + $0x30] sm:$0xff] 0.0
          %194 = vst [vmem:[#allocation2 + $0x38] sm:$0xff] 0.0
        $region32: #{tpu_custom_call.1} parent=27 // pred_fallthru
          _
        %v195 = vld [vmem:[%s180] sm:$0xff]
        %v196 = vld [vmem:[%s180 + $0x8] sm:$0xff]
        %v197 = vld [vmem:[%s180 + $0x10] sm:$0xff]
        %v198 = vld [vmem:[%s180 + $0x18] sm:$0xff]
        %v199 = vld [vmem:[%s180 + $0x20] sm:$0xff]
        %v200 = vld [vmem:[%s180 + $0x28] sm:$0xff]
        %v201 = vld [vmem:[%s180 + $0x30] sm:$0xff]
        %v202 = vld [vmem:[%s180 + $0x38] sm:$0xff]
        %v203 = vld [vmem:[%s180 + $0x40] sm:$0xff]
        %v204 = vld [vmem:[%s180 + $0x48] sm:$0xff]
        %v205 = vld [vmem:[%s180 + $0x50] sm:$0xff]
        %v206 = vld [vmem:[%s180 + $0x58] sm:$0xff]
        %v207 = vld [vmem:[%s180 + $0x60] sm:$0xff]
        %v208 = vld [vmem:[%s180 + $0x68] sm:$0xff]
        %v209 = vld [vmem:[%s180 + $0x70] sm:$0xff]
        %v210 = vld [vmem:[%s180 + $0x78] sm:$0xff]
        %s211 = smul.u32 %s21, 256
        %s212 = smul.u32 %s22, 256
        %s213 = sadd.s32 %s211, %s212
        %v214 = vstv %s213
        %v215 = vsub.s32 %v195, %v214
        %v216 = vsub.s32 %v196, %v214
        %v217 = vsub.s32 %v197, %v214
        %v218 = vsub.s32 %v198, %v214
        %v219 = vsub.s32 %v199, %v214
        %v220 = vsub.s32 %v200, %v214
        %v221 = vsub.s32 %v201, %v214
        %v222 = vsub.s32 %v202, %v214
        %v223 = vsub.s32 %v203, %v214
        %v224 = vsub.s32 %v204, %v214
        %v225 = vsub.s32 %v205, %v214
        %v226 = vsub.s32 %v206, %v214
        %v227 = vsub.s32 %v207, %v214
        %v228 = vsub.s32 %v208, %v214
        %v229 = vsub.s32 %v209, %v214
        %v230 = vsub.s32 %v210, %v214
        %v231 = vlaneseq
        %v232 = vand.u32 %v231, 127
        %v233 = vadd.s32 %v232, 128
        %234 = vset.pattern.permute.xlu0 0
        %235 = vperm.xlu0 %234, %v215
        %v236 = vpop.permute.xlu0 %235
        %237 = vset.pattern.permute.xlu0 0
        %238 = vperm.xlu0 %237, %v216
        %v239 = vpop.permute.xlu0 %238
        %240 = vset.pattern.permute.xlu0 0
        %241 = vperm.xlu0 %240, %v217
        %v242 = vpop.permute.xlu0 %241
        %243 = vset.pattern.permute.xlu0 0
        %244 = vperm.xlu0 %243, %v218
        %v245 = vpop.permute.xlu0 %244
        %246 = vset.pattern.permute.xlu0 0
        %247 = vperm.xlu0 %246, %v219
        %v248 = vpop.permute.xlu0 %247
        %249 = vset.pattern.permute.xlu0 0
        %250 = vperm.xlu0 %249, %v220
        %v251 = vpop.permute.xlu0 %250
        %252 = vset.pattern.permute.xlu0 0
        %253 = vperm.xlu0 %252, %v221
        %v254 = vpop.permute.xlu0 %253
        %255 = vset.pattern.permute.xlu0 0
        %256 = vperm.xlu0 %255, %v222
        %v257 = vpop.permute.xlu0 %256
        %258 = vset.pattern.permute.xlu0 0
        %259 = vperm.xlu0 %258, %v223
        %v260 = vpop.permute.xlu0 %259
        %261 = vset.pattern.permute.xlu0 0
        %262 = vperm.xlu0 %261, %v224
        %v263 = vpop.permute.xlu0 %262
        %264 = vset.pattern.permute.xlu0 0
        %265 = vperm.xlu0 %264, %v225
        %v266 = vpop.permute.xlu0 %265
        %267 = vset.pattern.permute.xlu0 0
        %268 = vperm.xlu0 %267, %v226
        %v269 = vpop.permute.xlu0 %268
        %270 = vset.pattern.permute.xlu0 0
        %271 = vperm.xlu0 %270, %v227
        %v272 = vpop.permute.xlu0 %271
        %273 = vset.pattern.permute.xlu0 0
        %274 = vperm.xlu0 %273, %v228
        %v275 = vpop.permute.xlu0 %274
        %276 = vset.pattern.permute.xlu0 0
        %277 = vperm.xlu0 %276, %v229
        %v278 = vpop.permute.xlu0 %277
        %279 = vset.pattern.permute.xlu0 0
        %280 = vperm.xlu0 %279, %v230
        %v281 = vpop.permute.xlu0 %280
        %vm282 = vcmp.eq.s32.totalorder %v236, %v232
        %vm283 = vcmp.eq.s32.totalorder %v236, %v233
        %vm284 = vcmp.eq.s32.totalorder %v239, %v232
        %vm285 = vcmp.eq.s32.totalorder %v239, %v233
        %vm286 = vcmp.eq.s32.totalorder %v242, %v232
        %vm287 = vcmp.eq.s32.totalorder %v242, %v233
        %vm288 = vcmp.eq.s32.totalorder %v245, %v232
        %vm289 = vcmp.eq.s32.totalorder %v245, %v233
        %vm290 = vcmp.eq.s32.totalorder %v248, %v232
        %vm291 = vcmp.eq.s32.totalorder %v248, %v233
        %vm292 = vcmp.eq.s32.totalorder %v251, %v232
        %vm293 = vcmp.eq.s32.totalorder %v251, %v233
        %vm294 = vcmp.eq.s32.totalorder %v254, %v232
        %vm295 = vcmp.eq.s32.totalorder %v254, %v233
        %vm296 = vcmp.eq.s32.totalorder %v257, %v232
        %vm297 = vcmp.eq.s32.totalorder %v257, %v233
        %vm298 = vcmp.eq.s32.totalorder %v260, %v232
        %vm299 = vcmp.eq.s32.totalorder %v260, %v233
        %vm300 = vcmp.eq.s32.totalorder %v263, %v232
        %vm301 = vcmp.eq.s32.totalorder %v263, %v233
        %vm302 = vcmp.eq.s32.totalorder %v266, %v232
        %vm303 = vcmp.eq.s32.totalorder %v266, %v233
        %vm304 = vcmp.eq.s32.totalorder %v269, %v232
        %vm305 = vcmp.eq.s32.totalorder %v269, %v233
        %vm306 = vcmp.eq.s32.totalorder %v272, %v232
        %vm307 = vcmp.eq.s32.totalorder %v272, %v233
        %vm308 = vcmp.eq.s32.totalorder %v275, %v232
        %vm309 = vcmp.eq.s32.totalorder %v275, %v233
        %vm310 = vcmp.eq.s32.totalorder %v278, %v232
        %vm311 = vcmp.eq.s32.totalorder %v278, %v233
        %vm312 = vcmp.eq.s32.totalorder %v281, %v232
        %vm313 = vcmp.eq.s32.totalorder %v281, %v233
        %v314 = vsel %vm282, 1, 0
        %v315 = vsel %vm283, 1, 0
        %v316 = vsel %vm284, 1, 0
        %v317 = vsel %vm285, 1, 0
        %v318 = vsel %vm286, 1, 0
        %v319 = vsel %vm287, 1, 0
        %v320 = vsel %vm288, 1, 0
        %v321 = vsel %vm289, 1, 0
        %v322 = vsel %vm290, 1, 0
        %v323 = vsel %vm291, 1, 0
        %v324 = vsel %vm292, 1, 0
        %v325 = vsel %vm293, 1, 0
        %v326 = vsel %vm294, 1, 0
        %v327 = vsel %vm295, 1, 0
        %v328 = vsel %vm296, 1, 0
        %v329 = vsel %vm297, 1, 0
        %v330 = vsel %vm298, 1, 0
        %v331 = vsel %vm299, 1, 0
        %v332 = vsel %vm300, 1, 0
        %v333 = vsel %vm301, 1, 0
        %v334 = vsel %vm302, 1, 0
        %v335 = vsel %vm303, 1, 0
        %v336 = vsel %vm304, 1, 0
        %v337 = vsel %vm305, 1, 0
        %v338 = vsel %vm306, 1, 0
        %v339 = vsel %vm307, 1, 0
        %v340 = vsel %vm308, 1, 0
        %v341 = vsel %vm309, 1, 0
        %v342 = vsel %vm310, 1, 0
        %v343 = vsel %vm311, 1, 0
        %v344 = vsel %vm312, 1, 0
        %v345 = vsel %vm313, 1, 0
        %v346 = vcvt.s32.f32 %v314
        %v347 = vcvt.s32.f32 %v315
        %v348 = vcvt.s32.f32 %v316
        %v349 = vcvt.s32.f32 %v317
        %v350 = vcvt.s32.f32 %v318
        %v351 = vcvt.s32.f32 %v319
        %v352 = vcvt.s32.f32 %v320
        %v353 = vcvt.s32.f32 %v321
        %v354 = vcvt.s32.f32 %v322
        %v355 = vcvt.s32.f32 %v323
        %v356 = vcvt.s32.f32 %v324
        %v357 = vcvt.s32.f32 %v325
        %v358 = vcvt.s32.f32 %v326
        %v359 = vcvt.s32.f32 %v327
        %v360 = vcvt.s32.f32 %v328
        %v361 = vcvt.s32.f32 %v329
        %v362 = vcvt.s32.f32 %v330
        %v363 = vcvt.s32.f32 %v331
        %v364 = vcvt.s32.f32 %v332
        %v365 = vcvt.s32.f32 %v333
        %v366 = vcvt.s32.f32 %v334
        %v367 = vcvt.s32.f32 %v335
        %v368 = vcvt.s32.f32 %v336
        %v369 = vcvt.s32.f32 %v337
        %v370 = vcvt.s32.f32 %v338
        %v371 = vcvt.s32.f32 %v339
        %v372 = vcvt.s32.f32 %v340
        %v373 = vcvt.s32.f32 %v341
        %v374 = vcvt.s32.f32 %v342
        %v375 = vcvt.s32.f32 %v343
        %v376 = vcvt.s32.f32 %v344
        %v377 = vcvt.s32.f32 %v345
        %v378 = vld [vmem:[#allocation2] sm:$0xff]
        %v379 = vld [vmem:[#allocation2 + $0x8] sm:$0xff]
        %v380 = vld [vmem:[#allocation2 + $0x10] sm:$0xff]
        %v381 = vld [vmem:[#allocation2 + $0x18] sm:$0xff]
        %v382 = vld [vmem:[#allocation2 + $0x20] sm:$0xff]
        %v383 = vld [vmem:[#allocation2 + $0x28] sm:$0xff]
        %v384 = vld [vmem:[#allocation2 + $0x30] sm:$0xff]
        %v385 = vld [vmem:[#allocation2 + $0x38] sm:$0xff]
        %v386 = vld [vmem:[%s175] sm:$0xff]
        %v387 = vld [vmem:[%s175 + $0x8] sm:$0xff]
        %v388 = vld [vmem:[%s175 + $0x10] sm:$0xff]
        %v389 = vld [vmem:[%s175 + $0x18] sm:$0xff]
        %v390 = vand.u32 %v347, 4294901760
        %391 = vmatprep.subr.mxu0 %v390
        %v392 = vand.u32 %v346, 4294901760
        %393 = vmatpush1.msra.mxu0 %v392
        %v394 = vand.u32 %v349, 4294901760
        %395 = vmatprep.subr.mxu0 %v394
        %v396 = vand.u32 %v348, 4294901760
        %397 = vmatpush1.msra.mxu0 %v396
        %v398 = vand.u32 %v351, 4294901760
        %399 = vmatprep.subr.mxu0 %v398
        %v400 = vand.u32 %v350, 4294901760
        %401 = vmatpush1.msra.mxu0 %v400
        %v402 = vand.u32 %v353, 4294901760
        %403 = vmatprep.subr.mxu0 %v402
        %v404 = vand.u32 %v352, 4294901760
        %405 = vmatpush1.msra.mxu0 %v404
        %v406 = vand.u32 %v355, 4294901760
        %407 = vmatprep.subr.mxu0 %v406
        %v408 = vand.u32 %v354, 4294901760
        %409 = vmatpush1.msra.mxu0 %v408
        %v410 = vand.u32 %v357, 4294901760
        %411 = vmatprep.subr.mxu0 %v410
        %v412 = vand.u32 %v356, 4294901760
        %413 = vmatpush1.msra.mxu0 %v412
        %v414 = vand.u32 %v359, 4294901760
        %415 = vmatprep.subr.mxu0 %v414
        %v416 = vand.u32 %v358, 4294901760
        %417 = vmatpush1.msra.mxu0 %v416
        %v418 = vand.u32 %v361, 4294901760
        %419 = vmatprep.subr.mxu0 %v418
        %v420 = vand.u32 %v360, 4294901760
        %421 = vmatpush1.msra.mxu0 %v420
        %v422 = vand.u32 %v363, 4294901760
        %423 = vmatprep.subr.mxu0 %v422
        %v424 = vand.u32 %v362, 4294901760
        %425 = vmatpush1.msra.mxu0 %v424
        %v426 = vand.u32 %v365, 4294901760
        %427 = vmatprep.subr.mxu0 %v426
        %v428 = vand.u32 %v364, 4294901760
        %429 = vmatpush1.msra.mxu0 %v428
        %v430 = vand.u32 %v367, 4294901760
        %431 = vmatprep.subr.mxu0 %v430
        %v432 = vand.u32 %v366, 4294901760
        %433 = vmatpush1.msra.mxu0 %v432
        %v434 = vand.u32 %v369, 4294901760
        %435 = vmatprep.subr.mxu0 %v434
        %v436 = vand.u32 %v368, 4294901760
        %437 = vmatpush1.msra.mxu0 %v436
        %v438 = vand.u32 %v371, 4294901760
        %439 = vmatprep.subr.mxu0 %v438
        %v440 = vand.u32 %v370, 4294901760
        %441 = vmatpush1.msra.mxu0 %v440
        %v442 = vand.u32 %v373, 4294901760
        %443 = vmatprep.subr.mxu0 %v442
        %v444 = vand.u32 %v372, 4294901760
        %445 = vmatpush1.msra.mxu0 %v444
        %v446 = vand.u32 %v375, 4294901760
        %447 = vmatprep.subr.mxu0 %v446
        %v448 = vand.u32 %v374, 4294901760
        %449 = vmatpush1.msra.mxu0 %v448
        %v450 = vand.u32 %v377, 4294901760
        %451 = vmatprep.subr.mxu0 %v450
        %v452 = vand.u32 %v376, 4294901760
        %453 = vmatpush1.msra.mxu0 %v452
        %454 = vmatprep.subr.mxu0 0.0
        %455 = vmatpush1.msra.mxu0 0.0
        %456 = vmatprep.subr.mxu0 0.0
        %457 = vmatpush1.msra.mxu0 0.0
        %458 = vmatprep.subr.mxu0 0.0
        %459 = vmatpush1.msra.mxu0 0.0
        %460 = vmatprep.subr.mxu0 0.0
        %461 = vmatpush1.msra.mxu0 0.0
        %462 = vmatprep.subr.mxu0 0.0
        %463 = vmatpush1.msra.mxu0 0.0
        %464 = vmatprep.subr.mxu0 0.0
        %465 = vmatpush1.msra.mxu0 0.0
        %466 = vmatprep.subr.mxu0 0.0
        %467 = vmatpush1.msra.mxu0 0.0
        %468 = vmatprep.subr.mxu0 0.0
        %469 = vmatpush1.msra.mxu0 0.0
        %470 = vmatprep.subr.mxu0 0.0
        %471 = vmatpush1.msra.mxu0 0.0
        %472 = vmatprep.subr.mxu0 0.0
        %473 = vmatpush1.msra.mxu0 0.0
        %474 = vmatprep.subr.mxu0 0.0
        %475 = vmatpush1.msra.mxu0 0.0
        %476 = vmatprep.subr.mxu0 0.0
        %477 = vmatpush1.msra.mxu0 0.0
        %478 = vmatprep.subr.mxu0 0.0
        %479 = vmatpush1.msra.mxu0 0.0
        %480 = vmatprep.subr.mxu0 0.0
        %481 = vmatpush1.msra.mxu0 0.0
        %482 = vmatprep.subr.mxu0 0.0
        %483 = vmatpush1.msra.mxu0 0.0
        %484 = vmatprep.subr.mxu0 0.0
        %485 = vmatpush1.msra.mxu0 0.0
        %486 = vmatprep.mubr.f32.mxu0 0.0
        %v487 = vand.u32 %v386, 4294901760
        %v488 = vsub.f32 %v386, %v487
        %v489 = vand.u32 %v488, 4294901760
        %v490 = vsub.f32 %v488, %v489
        %v491 = vand.u32 %v490, 4294901760
        %492 = vmatmul.mubr.f32.gmra.mrb[0].mxu0 %v491
        %v493 = vpop.f32.mrb[0].mxu0
        %v494 = vadd.f32 0.0, %v493
        %v495 = vpop.f32.mrb[0].mxu0
        %v496 = vadd.f32 0.0, %v495
        %497 = vmatprep.mubr.f32.mxu0 0.0
        %v498 = vand.u32 %v387, 4294901760
        %v499 = vsub.f32 %v387, %v498
        %v500 = vand.u32 %v499, 4294901760
        %v501 = vsub.f32 %v499, %v500
        %v502 = vand.u32 %v501, 4294901760
        %503 = vmatmul.mubr.f32.gmra.mrb[0].mxu0 %v502
        %v504 = vpop.f32.mrb[0].mxu0
        %v505 = vadd.f32 0.0, %v504
        %v506 = vpop.f32.mrb[0].mxu0
        %v507 = vadd.f32 0.0, %v506
        %508 = vmatprep.mubr.f32.mxu0 0.0
        %v509 = vand.u32 %v388, 4294901760
        %v510 = vsub.f32 %v388, %v509
        %v511 = vand.u32 %v510, 4294901760
        %v512 = vsub.f32 %v510, %v511
        %v513 = vand.u32 %v512, 4294901760
        %514 = vmatmul.mubr.f32.gmra.mrb[0].mxu0 %v513
        %v515 = vpop.f32.mrb[0].mxu0
        %v516 = vadd.f32 0.0, %v515
        %v517 = vpop.f32.mrb[0].mxu0
        %v518 = vadd.f32 0.0, %v517
        %519 = vmatprep.mubr.f32.mxu0 0.0
        %v520 = vand.u32 %v389, 4294901760
        %v521 = vsub.f32 %v389, %v520
        %v522 = vand.u32 %v521, 4294901760
        %v523 = vsub.f32 %v521, %v522
        %v524 = vand.u32 %v523, 4294901760
        %525 = vmatmul.mubr.f32.gmra.mrb[0].mxu0 %v524
        %v526 = vpop.f32.mrb[0].mxu0
        %v527 = vadd.f32 0.0, %v526
        %v528 = vpop.f32.mrb[0].mxu0
        %v529 = vadd.f32 0.0, %v528
        %530 = vdwg.mxu0
        %v531 = vand.u32 %v347, 4294901760
        %v532 = vsub.f32 %v347, %v531
        %v533 = vand.u32 %v532, 4294901760
        %v534 = vsub.f32 %v532, %v533
        %v535 = vand.u32 %v534, 4294901760
        %536 = vmatprep.subr.mxu0 %v535
        %v537 = vand.u32 %v346, 4294901760
        %v538 = vsub.f32 %v346, %v537
        %v539 = vand.u32 %v538, 4294901760
        %v540 = vsub.f32 %v538, %v539
        %v541 = vand.u32 %v540, 4294901760
        %542 = vmatpush1.msra.mxu0 %v541
        %v543 = vand.u32 %v349, 4294901760
        %v544 = vsub.f32 %v349, %v543
        %v545 = vand.u32 %v544, 4294901760
        %v546 = vsub.f32 %v544, %v545
        %v547 = vand.u32 %v546, 4294901760
        %548 = vmatprep.subr.mxu0 %v547
        %v549 = vand.u32 %v348, 4294901760
        %v550 = vsub.f32 %v348, %v549
        %v551 = vand.u32 %v550, 4294901760
        %v552 = vsub.f32 %v550, %v551
        %v553 = vand.u32 %v552, 4294901760
        %554 = vmatpush1.msra.mxu0 %v553
        %v555 = vand.u32 %v351, 4294901760
        %v556 = vsub.f32 %v351, %v555
        %v557 = vand.u32 %v556, 4294901760
        %v558 = vsub.f32 %v556, %v557
        %v559 = vand.u32 %v558, 4294901760
        %560 = vmatprep.subr.mxu0 %v559
        %v561 = vand.u32 %v350, 4294901760
        %v562 = vsub.f32 %v350, %v561
        %v563 = vand.u32 %v562, 4294901760
        %v564 = vsub.f32 %v562, %v563
        %v565 = vand.u32 %v564, 4294901760
        %566 = vmatpush1.msra.mxu0 %v565
        %v567 = vand.u32 %v353, 4294901760
        %v568 = vsub.f32 %v353, %v567
        %v569 = vand.u32 %v568, 4294901760
        %v570 = vsub.f32 %v568, %v569
        %v571 = vand.u32 %v570, 4294901760
        %572 = vmatprep.subr.mxu0 %v571
        %v573 = vand.u32 %v352, 4294901760
        %v574 = vsub.f32 %v352, %v573
        %v575 = vand.u32 %v574, 4294901760
        %v576 = vsub.f32 %v574, %v575
        %v577 = vand.u32 %v576, 4294901760
        %578 = vmatpush1.msra.mxu0 %v577
        %v579 = vand.u32 %v355, 4294901760
        %v580 = vsub.f32 %v355, %v579
        %v581 = vand.u32 %v580, 4294901760
        %v582 = vsub.f32 %v580, %v581
        %v583 = vand.u32 %v582, 4294901760
        %584 = vmatprep.subr.mxu0 %v583
        %v585 = vand.u32 %v354, 4294901760
        %v586 = vsub.f32 %v354, %v585
        %v587 = vand.u32 %v586, 4294901760
        %v588 = vsub.f32 %v586, %v587
        %v589 = vand.u32 %v588, 4294901760
        %590 = vmatpush1.msra.mxu0 %v589
        %v591 = vand.u32 %v357, 4294901760
        %v592 = vsub.f32 %v357, %v591
        %v593 = vand.u32 %v592, 4294901760
        %v594 = vsub.f32 %v592, %v593
        %v595 = vand.u32 %v594, 4294901760
        %596 = vmatprep.subr.mxu0 %v595
        %v597 = vand.u32 %v356, 4294901760
        %v598 = vsub.f32 %v356, %v597
        %v599 = vand.u32 %v598, 4294901760
        %v600 = vsub.f32 %v598, %v599
        %v601 = vand.u32 %v600, 4294901760
        %602 = vmatpush1.msra.mxu0 %v601
        %v603 = vand.u32 %v359, 4294901760
        %v604 = vsub.f32 %v359, %v603
        %v605 = vand.u32 %v604, 4294901760
        %v606 = vsub.f32 %v604, %v605
        %v607 = vand.u32 %v606, 4294901760
        %608 = vmatprep.subr.mxu0 %v607
        %v609 = vand.u32 %v358, 4294901760
        %v610 = vsub.f32 %v358, %v609
        %v611 = vand.u32 %v610, 4294901760
        %v612 = vsub.f32 %v610, %v611
        %v613 = vand.u32 %v612, 4294901760
        %614 = vmatpush1.msra.mxu0 %v613
        %v615 = vand.u32 %v361, 4294901760
        %v616 = vsub.f32 %v361, %v615
        %v617 = vand.u32 %v616, 4294901760
        %v618 = vsub.f32 %v616, %v617
        %v619 = vand.u32 %v618, 4294901760
        %620 = vmatprep.subr.mxu0 %v619
        %v621 = vand.u32 %v360, 4294901760
        %v622 = vsub.f32 %v360, %v621
        %v623 = vand.u32 %v622, 4294901760
        %v624 = vsub.f32 %v622, %v623
        %v625 = vand.u32 %v624, 4294901760
        %626 = vmatpush1.msra.mxu0 %v625
        %v627 = vand.u32 %v363, 4294901760
        %v628 = vsub.f32 %v363, %v627
        %v629 = vand.u32 %v628, 4294901760
        %v630 = vsub.f32 %v628, %v629
        %v631 = vand.u32 %v630, 4294901760
        %632 = vmatprep.subr.mxu0 %v631
        %v633 = vand.u32 %v362, 4294901760
        %v634 = vsub.f32 %v362, %v633
        %v635 = vand.u32 %v634, 4294901760
        %v636 = vsub.f32 %v634, %v635
        %v637 = vand.u32 %v636, 4294901760
        %638 = vmatpush1.msra.mxu0 %v637
        %v639 = vand.u32 %v365, 4294901760
        %v640 = vsub.f32 %v365, %v639
        %v641 = vand.u32 %v640, 4294901760
        %v642 = vsub.f32 %v640, %v641
        %v643 = vand.u32 %v642, 4294901760
        %644 = vmatprep.subr.mxu0 %v643
        %v645 = vand.u32 %v364, 4294901760
        %v646 = vsub.f32 %v364, %v645
        %v647 = vand.u32 %v646, 4294901760
        %v648 = vsub.f32 %v646, %v647
        %v649 = vand.u32 %v648, 4294901760
        %650 = vmatpush1.msra.mxu0 %v649
        %v651 = vand.u32 %v367, 4294901760
        %v652 = vsub.f32 %v367, %v651
        %v653 = vand.u32 %v652, 4294901760
        %v654 = vsub.f32 %v652, %v653
        %v655 = vand.u32 %v654, 4294901760
        %656 = vmatprep.subr.mxu0 %v655
        %v657 = vand.u32 %v366, 4294901760
        %v658 = vsub.f32 %v366, %v657
        %v659 = vand.u32 %v658, 4294901760
        %v660 = vsub.f32 %v658, %v659
        %v661 = vand.u32 %v660, 4294901760
        %662 = vmatpush1.msra.mxu0 %v661
        %v663 = vand.u32 %v369, 4294901760
        %v664 = vsub.f32 %v369, %v663
        %v665 = vand.u32 %v664, 4294901760
        %v666 = vsub.f32 %v664, %v665
        %v667 = vand.u32 %v666, 4294901760
        %668 = vmatprep.subr.mxu0 %v667
        %v669 = vand.u32 %v368, 4294901760
        %v670 = vsub.f32 %v368, %v669
        %v671 = vand.u32 %v670, 4294901760
        %v672 = vsub.f32 %v670, %v671
        %v673 = vand.u32 %v672, 4294901760
        %674 = vmatpush1.msra.mxu0 %v673
        %v675 = vand.u32 %v371, 4294901760
        %v676 = vsub.f32 %v371, %v675
        %v677 = vand.u32 %v676, 4294901760
        %v678 = vsub.f32 %v676, %v677
        %v679 = vand.u32 %v678, 4294901760
        %680 = vmatprep.subr.mxu0 %v679
        %v681 = vand.u32 %v370, 4294901760
        %v682 = vsub.f32 %v370, %v681
        %v683 = vand.u32 %v682, 4294901760
        %v684 = vsub.f32 %v682, %v683
        %v685 = vand.u32 %v684, 4294901760
        %686 = vmatpush1.msra.mxu0 %v685
        %v687 = vand.u32 %v373, 4294901760
        %v688 = vsub.f32 %v373, %v687
        %v689 = vand.u32 %v688, 4294901760
        %v690 = vsub.f32 %v688, %v689
        %v691 = vand.u32 %v690, 4294901760
        %692 = vmatprep.subr.mxu0 %v691
        %v693 = vand.u32 %v372, 4294901760
        %v694 = vsub.f32 %v372, %v693
        %v695 = vand.u32 %v694, 4294901760
        %v696 = vsub.f32 %v694, %v695
        %v697 = vand.u32 %v696, 4294901760
        %698 = vmatpush1.msra.mxu0 %v697
        %v699 = vand.u32 %v375, 4294901760
        %v700 = vsub.f32 %v375, %v699
        %v701 = vand.u32 %v700, 4294901760
        %v702 = vsub.f32 %v700, %v701
        %v703 = vand.u32 %v702, 4294901760
        %704 = vmatprep.subr.mxu0 %v703
        %v705 = vand.u32 %v374, 4294901760
        %v706 = vsub.f32 %v374, %v705
        %v707 = vand.u32 %v706, 4294901760
        %v708 = vsub.f32 %v706, %v707
        %v709 = vand.u32 %v708, 4294901760
        %710 = vmatpush1.msra.mxu0 %v709
        %v711 = vand.u32 %v377, 4294901760
        %v712 = vsub.f32 %v377, %v711
        %v713 = vand.u32 %v712, 4294901760
        %v714 = vsub.f32 %v712, %v713
        %v715 = vand.u32 %v714, 4294901760
        %716 = vmatprep.subr.mxu0 %v715
        %v717 = vand.u32 %v376, 4294901760
        %v718 = vsub.f32 %v376, %v717
        %v719 = vand.u32 %v718, 4294901760
        %v720 = vsub.f32 %v718, %v719
        %v721 = vand.u32 %v720, 4294901760
        %722 = vmatpush1.msra.mxu0 %v721
        %723 = vmatprep.subr.mxu0 0.0
        %724 = vmatpush1.msra.mxu0 0.0
        %725 = vmatprep.subr.mxu0 0.0
        %726 = vmatpush1.msra.mxu0 0.0
        %727 = vmatprep.subr.mxu0 0.0
        %728 = vmatpush1.msra.mxu0 0.0
        %729 = vmatprep.subr.mxu0 0.0
        %730 = vmatpush1.msra.mxu0 0.0
        %731 = vmatprep.subr.mxu0 0.0
        %732 = vmatpush1.msra.mxu0 0.0
        %733 = vmatprep.subr.mxu0 0.0
        %734 = vmatpush1.msra.mxu0 0.0
        %735 = vmatprep.subr.mxu0 0.0
        %736 = vmatpush1.msra.mxu0 0.0
        %737 = vmatprep.subr.mxu0 0.0
        %738 = vmatpush1.msra.mxu0 0.0
        %739 = vmatprep.subr.mxu0 0.0
        %740 = vmatpush1.msra.mxu0 0.0
        %741 = vmatprep.subr.mxu0 0.0
        %742 = vmatpush1.msra.mxu0 0.0
        %743 = vmatprep.subr.mxu0 0.0
        %744 = vmatpush1.msra.mxu0 0.0
        %745 = vmatprep.subr.mxu0 0.0
        %746 = vmatpush1.msra.mxu0 0.0
        %747 = vmatprep.subr.mxu0 0.0
        %748 = vmatpush1.msra.mxu0 0.0
        %749 = vmatprep.subr.mxu0 0.0
        %750 = vmatpush1.msra.mxu0 0.0
        %751 = vmatprep.subr.mxu0 0.0
        %752 = vmatpush1.msra.mxu0 0.0
        %753 = vmatprep.subr.mxu0 0.0
        %754 = vmatpush1.msra.mxu0 0.0
        %755 = vmatprep.mubr.f32.mxu0 0.0
        %v756 = vand.u32 %v386, 4294901760
        %757 = vmatmul.mubr.f32.gmra.mrb[0].mxu0 %v756
        %v758 = vpop.f32.mrb[0].mxu0
        %v759 = vadd.f32 %v494, %v758
        %v760 = vpop.f32.mrb[0].mxu0
        %v761 = vadd.f32 %v496, %v760
        %762 = vmatprep.mubr.f32.mxu0 0.0
        %v763 = vand.u32 %v387, 4294901760
        %764 = vmatmul.mubr.f32.gmra.mrb[0].mxu0 %v763
        %v765 = vpop.f32.mrb[0].mxu0
        %v766 = vadd.f32 %v505, %v765
        %v767 = vpop.f32.mrb[0].mxu0
        %v768 = vadd.f32 %v507, %v767
        %769 = vmatprep.mubr.f32.mxu0 0.0
        %v770 = vand.u32 %v388, 4294901760
        %771 = vmatmul.mubr.f32.gmra.mrb[0].mxu0 %v770
        %v772 = vpop.f32.mrb[0].mxu0
        %v773 = vadd.f32 %v516, %v772
        %v774 = vpop.f32.mrb[0].mxu0
        %v775 = vadd.f32 %v518, %v774
        %776 = vmatprep.mubr.f32.mxu0 0.0
        %v777 = vand.u32 %v389, 4294901760
        %778 = vmatmul.mubr.f32.gmra.mrb[0].mxu0 %v777
        %v779 = vpop.f32.mrb[0].mxu0
        %v780 = vadd.f32 %v527, %v779
        %v781 = vpop.f32.mrb[0].mxu0
        %v782 = vadd.f32 %v529, %v781
        %783 = vdwg.mxu0
        %v784 = vand.u32 %v347, 4294901760
        %v785 = vsub.f32 %v347, %v784
        %786 = vmatprep.subr.mxu0 %v785
        %v787 = vand.u32 %v346, 4294901760
        %v788 = vsub.f32 %v346, %v787
        %789 = vmatpush1.msra.mxu0 %v788
        %v790 = vand.u32 %v349, 4294901760
        %v791 = vsub.f32 %v349, %v790
        %792 = vmatprep.subr.mxu0 %v791
        %v793 = vand.u32 %v348, 4294901760
        %v794 = vsub.f32 %v348, %v793
        %795 = vmatpush1.msra.mxu0 %v794
        %v796 = vand.u32 %v351, 4294901760
        %v797 = vsub.f32 %v351, %v796
        %798 = vmatprep.subr.mxu0 %v797
        %v799 = vand.u32 %v350, 4294901760
        %v800 = vsub.f32 %v350, %v799
        %801 = vmatpush1.msra.mxu0 %v800
        %v802 = vand.u32 %v353, 4294901760
        %v803 = vsub.f32 %v353, %v802
        %804 = vmatprep.subr.mxu0 %v803
        %v805 = vand.u32 %v352, 4294901760
        %v806 = vsub.f32 %v352, %v805
        %807 = vmatpush1.msra.mxu0 %v806
        %v808 = vand.u32 %v355, 4294901760
        %v809 = vsub.f32 %v355, %v808
        %810 = vmatprep.subr.mxu0 %v809
        %v811 = vand.u32 %v354, 4294901760
        %v812 = vsub.f32 %v354, %v811
        %813 = vmatpush1.msra.mxu0 %v812
        %v814 = vand.u32 %v357, 4294901760
        %v815 = vsub.f32 %v357, %v814
        %816 = vmatprep.subr.mxu0 %v815
        %v817 = vand.u32 %v356, 4294901760
        %v818 = vsub.f32 %v356, %v817
        %819 = vmatpush1.msra.mxu0 %v818
        %v820 = vand.u32 %v359, 4294901760
        %v821 = vsub.f32 %v359, %v820
        %822 = vmatprep.subr.mxu0 %v821
        %v823 = vand.u32 %v358, 4294901760
        %v824 = vsub.f32 %v358, %v823
        %825 = vmatpush1.msra.mxu0 %v824
        %v826 = vand.u32 %v361, 4294901760
        %v827 = vsub.f32 %v361, %v826
        %828 = vmatprep.subr.mxu0 %v827
        %v829 = vand.u32 %v360, 4294901760
        %v830 = vsub.f32 %v360, %v829
        %831 = vmatpush1.msra.mxu0 %v830
        %v832 = vand.u32 %v363, 4294901760
        %v833 = vsub.f32 %v363, %v832
        %834 = vmatprep.subr.mxu0 %v833
        %v835 = vand.u32 %v362, 4294901760
        %v836 = vsub.f32 %v362, %v835
        %837 = vmatpush1.msra.mxu0 %v836
        %v838 = vand.u32 %v365, 4294901760
        %v839 = vsub.f32 %v365, %v838
        %840 = vmatprep.subr.mxu0 %v839
        %v841 = vand.u32 %v364, 4294901760
        %v842 = vsub.f32 %v364, %v841
        %843 = vmatpush1.msra.mxu0 %v842
        %v844 = vand.u32 %v367, 4294901760
        %v845 = vsub.f32 %v367, %v844
        %846 = vmatprep.subr.mxu0 %v845
        %v847 = vand.u32 %v366, 4294901760
        %v848 = vsub.f32 %v366, %v847
        %849 = vmatpush1.msra.mxu0 %v848
        %v850 = vand.u32 %v369, 4294901760
        %v851 = vsub.f32 %v369, %v850
        %852 = vmatprep.subr.mxu0 %v851
        %v853 = vand.u32 %v368, 4294901760
        %v854 = vsub.f32 %v368, %v853
        %855 = vmatpush1.msra.mxu0 %v854
        %v856 = vand.u32 %v371, 4294901760
        %v857 = vsub.f32 %v371, %v856
        %858 = vmatprep.subr.mxu0 %v857
        %v859 = vand.u32 %v370, 4294901760
        %v860 = vsub.f32 %v370, %v859
        %861 = vmatpush1.msra.mxu0 %v860
        %v862 = vand.u32 %v373, 4294901760
        %v863 = vsub.f32 %v373, %v862
        %864 = vmatprep.subr.mxu0 %v863
        %v865 = vand.u32 %v372, 4294901760
        %v866 = vsub.f32 %v372, %v865
        %867 = vmatpush1.msra.mxu0 %v866
        %v868 = vand.u32 %v375, 4294901760
        %v869 = vsub.f32 %v375, %v868
        %870 = vmatprep.subr.mxu0 %v869
        %v871 = vand.u32 %v374, 4294901760
        %v872 = vsub.f32 %v374, %v871
        %873 = vmatpush1.msra.mxu0 %v872
        %v874 = vand.u32 %v377, 4294901760
        %v875 = vsub.f32 %v377, %v874
        %876 = vmatprep.subr.mxu0 %v875
        %v877 = vand.u32 %v376, 4294901760
        %v878 = vsub.f32 %v376, %v877
        %879 = vmatpush1.msra.mxu0 %v878
        %880 = vmatprep.subr.mxu0 0.0
        %881 = vmatpush1.msra.mxu0 0.0
        %882 = vmatprep.subr.mxu0 0.0
        %883 = vmatpush1.msra.mxu0 0.0
        %884 = vmatprep.subr.mxu0 0.0
        %885 = vmatpush1.msra.mxu0 0.0
        %886 = vmatprep.subr.mxu0 0.0
        %887 = vmatpush1.msra.mxu0 0.0
        %888 = vmatprep.subr.mxu0 0.0
        %889 = vmatpush1.msra.mxu0 0.0
        %890 = vmatprep.subr.mxu0 0.0
        %891 = vmatpush1.msra.mxu0 0.0
        %892 = vmatprep.subr.mxu0 0.0
        %893 = vmatpush1.msra.mxu0 0.0
        %894 = vmatprep.subr.mxu0 0.0
        %895 = vmatpush1.msra.mxu0 0.0
        %896 = vmatprep.subr.mxu0 0.0
        %897 = vmatpush1.msra.mxu0 0.0
        %898 = vmatprep.subr.mxu0 0.0
        %899 = vmatpush1.msra.mxu0 0.0
        %900 = vmatprep.subr.mxu0 0.0
        %901 = vmatpush1.msra.mxu0 0.0
        %902 = vmatprep.subr.mxu0 0.0
        %903 = vmatpush1.msra.mxu0 0.0
        %904 = vmatprep.subr.mxu0 0.0
        %905 = vmatpush1.msra.mxu0 0.0
        %906 = vmatprep.subr.mxu0 0.0
        %907 = vmatpush1.msra.mxu0 0.0
        %908 = vmatprep.subr.mxu0 0.0
        %909 = vmatpush1.msra.mxu0 0.0
        %910 = vmatprep.subr.mxu0 0.0
        %911 = vmatpush1.msra.mxu0 0.0
        %912 = vmatprep.mubr.f32.mxu0 0.0
        %v913 = vand.u32 %v386, 4294901760
        %v914 = vsub.f32 %v386, %v913
        %915 = vmatmul.mubr.f32.gmra.mrb[0].mxu0 %v914
        %v916 = vpop.f32.mrb[0].mxu0
        %v917 = vadd.f32 %v759, %v916
        %v918 = vpop.f32.mrb[0].mxu0
        %v919 = vadd.f32 %v761, %v918
        %920 = vmatprep.mubr.f32.mxu0 0.0
        %v921 = vand.u32 %v387, 4294901760
        %v922 = vsub.f32 %v387, %v921
        %923 = vmatmul.mubr.f32.gmra.mrb[0].mxu0 %v922
        %v924 = vpop.f32.mrb[0].mxu0
        %v925 = vadd.f32 %v766, %v924
        %v926 = vpop.f32.mrb[0].mxu0
        %v927 = vadd.f32 %v768, %v926
        %928 = vmatprep.mubr.f32.mxu0 0.0
        %v929 = vand.u32 %v388, 4294901760
        %v930 = vsub.f32 %v388, %v929
        %931 = vmatmul.mubr.f32.gmra.mrb[0].mxu0 %v930
        %v932 = vpop.f32.mrb[0].mxu0
        %v933 = vadd.f32 %v773, %v932
        %v934 = vpop.f32.mrb[0].mxu0
        %v935 = vadd.f32 %v775, %v934
        %936 = vmatprep.mubr.f32.mxu0 0.0
        %v937 = vand.u32 %v389, 4294901760
        %v938 = vsub.f32 %v389, %v937
        %939 = vmatmul.mubr.f32.gmra.mrb[0].mxu0 %v938
        %v940 = vpop.f32.mrb[0].mxu0
        %v941 = vadd.f32 %v780, %v940
        %v942 = vpop.f32.mrb[0].mxu0
        %v943 = vadd.f32 %v782, %v942
        %944 = vdwg.mxu0
        %v945 = vand.u32 %v347, 4294901760
        %946 = vmatprep.subr.mxu0 %v945
        %v947 = vand.u32 %v346, 4294901760
        %948 = vmatpush1.msra.mxu0 %v947
        %v949 = vand.u32 %v349, 4294901760
        %950 = vmatprep.subr.mxu0 %v949
        %v951 = vand.u32 %v348, 4294901760
        %952 = vmatpush1.msra.mxu0 %v951
        %v953 = vand.u32 %v351, 4294901760
        %954 = vmatprep.subr.mxu0 %v953
        %v955 = vand.u32 %v350, 4294901760
        %956 = vmatpush1.msra.mxu0 %v955
        %v957 = vand.u32 %v353, 4294901760
        %958 = vmatprep.subr.mxu0 %v957
        %v959 = vand.u32 %v352, 4294901760
        %960 = vmatpush1.msra.mxu0 %v959
        %v961 = vand.u32 %v355, 4294901760
        %962 = vmatprep.subr.mxu0 %v961
        %v963 = vand.u32 %v354, 4294901760
        %964 = vmatpush1.msra.mxu0 %v963
        %v965 = vand.u32 %v357, 4294901760
        %966 = vmatprep.subr.mxu0 %v965
        %v967 = vand.u32 %v356, 4294901760
        %968 = vmatpush1.msra.mxu0 %v967
        %v969 = vand.u32 %v359, 4294901760
        %970 = vmatprep.subr.mxu0 %v969
        %v971 = vand.u32 %v358, 4294901760
        %972 = vmatpush1.msra.mxu0 %v971
        %v973 = vand.u32 %v361, 4294901760
        %974 = vmatprep.subr.mxu0 %v973
        %v975 = vand.u32 %v360, 4294901760
        %976 = vmatpush1.msra.mxu0 %v975
        %v977 = vand.u32 %v363, 4294901760
        %978 = vmatprep.subr.mxu0 %v977
        %v979 = vand.u32 %v362, 4294901760
        %980 = vmatpush1.msra.mxu0 %v979
        %v981 = vand.u32 %v365, 4294901760
        %982 = vmatprep.subr.mxu0 %v981
        %v983 = vand.u32 %v364, 4294901760
        %984 = vmatpush1.msra.mxu0 %v983
        %v985 = vand.u32 %v367, 4294901760
        %986 = vmatprep.subr.mxu0 %v985
        %v987 = vand.u32 %v366, 4294901760
        %988 = vmatpush1.msra.mxu0 %v987
        %v989 = vand.u32 %v369, 4294901760
        %990 = vmatprep.subr.mxu0 %v989
        %v991 = vand.u32 %v368, 4294901760
        %992 = vmatpush1.msra.mxu0 %v991
        %v993 = vand.u32 %v371, 4294901760
        %994 = vmatprep.subr.mxu0 %v993
        %v995 = vand.u32 %v370, 4294901760
        %996 = vmatpush1.msra.mxu0 %v995
        %v997 = vand.u32 %v373, 4294901760
        %998 = vmatprep.subr.mxu0 %v997
        %v999 = vand.u32 %v372, 4294901760
        %1000 = vmatpush1.msra.mxu0 %v999
        %v1001 = vand.u32 %v375, 4294901760
        %1002 = vmatprep.subr.mxu0 %v1001
        %v1003 = vand.u32 %v374, 4294901760
        %1004 = vmatpush1.msra.mxu0 %v1003
        %v1005 = vand.u32 %v377, 4294901760
        %1006 = vmatprep.subr.mxu0 %v1005
        %v1007 = vand.u32 %v376, 4294901760
        %1008 = vmatpush1.msra.mxu0 %v1007
        %1009 = vmatprep.subr.mxu0 0.0
        %1010 = vmatpush1.msra.mxu0 0.0
        %1011 = vmatprep.subr.mxu0 0.0
        %1012 = vmatpush1.msra.mxu0 0.0
        %1013 = vmatprep.subr.mxu0 0.0
        %1014 = vmatpush1.msra.mxu0 0.0
        %1015 = vmatprep.subr.mxu0 0.0
        %1016 = vmatpush1.msra.mxu0 0.0
        %1017 = vmatprep.subr.mxu0 0.0
        %1018 = vmatpush1.msra.mxu0 0.0
        %1019 = vmatprep.subr.mxu0 0.0
        %1020 = vmatpush1.msra.mxu0 0.0
        %1021 = vmatprep.subr.mxu0 0.0
        %1022 = vmatpush1.msra.mxu0 0.0
        %1023 = vmatprep.subr.mxu0 0.0
        %1024 = vmatpush1.msra.mxu0 0.0
        %1025 = vmatprep.subr.mxu0 0.0
        %1026 = vmatpush1.msra.mxu0 0.0
        %1027 = vmatprep.subr.mxu0 0.0
        %1028 = vmatpush1.msra.mxu0 0.0
        %1029 = vmatprep.subr.mxu0 0.0
        %1030 = vmatpush1.msra.mxu0 0.0
        %1031 = vmatprep.subr.mxu0 0.0
        %1032 = vmatpush1.msra.mxu0 0.0
        %1033 = vmatprep.subr.mxu0 0.0
        %1034 = vmatpush1.msra.mxu0 0.0
        %1035 = vmatprep.subr.mxu0 0.0
        %1036 = vmatpush1.msra.mxu0 0.0
        %1037 = vmatprep.subr.mxu0 0.0
        %1038 = vmatpush1.msra.mxu0 0.0
        %1039 = vmatprep.subr.mxu0 0.0
        %1040 = vmatpush1.msra.mxu0 0.0
        %1041 = vmatprep.mubr.f32.mxu0 0.0
        %v1042 = vand.u32 %v386, 4294901760
        %v1043 = vsub.f32 %v386, %v1042
        %v1044 = vand.u32 %v1043, 4294901760
        %1045 = vmatmul.mubr.f32.gmra.mrb[0].mxu0 %v1044
        %v1046 = vpop.f32.mrb[0].mxu0
        %v1047 = vadd.f32 %v917, %v1046
        %v1048 = vpop.f32.mrb[0].mxu0
        %v1049 = vadd.f32 %v919, %v1048
        %1050 = vmatprep.mubr.f32.mxu0 0.0
        %v1051 = vand.u32 %v387, 4294901760
        %v1052 = vsub.f32 %v387, %v1051
        %v1053 = vand.u32 %v1052, 4294901760
        %1054 = vmatmul.mubr.f32.gmra.mrb[0].mxu0 %v1053
        %v1055 = vpop.f32.mrb[0].mxu0
        %v1056 = vadd.f32 %v925, %v1055
        %v1057 = vpop.f32.mrb[0].mxu0
        %v1058 = vadd.f32 %v927, %v1057
        %1059 = vmatprep.mubr.f32.mxu0 0.0
        %v1060 = vand.u32 %v388, 4294901760
        %v1061 = vsub.f32 %v388, %v1060
        %v1062 = vand.u32 %v1061, 4294901760
        %1063 = vmatmul.mubr.f32.gmra.mrb[0].mxu0 %v1062
        %v1064 = vpop.f32.mrb[0].mxu0
        %v1065 = vadd.f32 %v933, %v1064
        %v1066 = vpop.f32.mrb[0].mxu0
        %v1067 = vadd.f32 %v935, %v1066
        %1068 = vmatprep.mubr.f32.mxu0 0.0
        %v1069 = vand.u32 %v389, 4294901760
        %v1070 = vsub.f32 %v389, %v1069
        %v1071 = vand.u32 %v1070, 4294901760
        %1072 = vmatmul.mubr.f32.gmra.mrb[0].mxu0 %v1071
        %v1073 = vpop.f32.mrb[0].mxu0
        %v1074 = vadd.f32 %v941, %v1073
        %v1075 = vpop.f32.mrb[0].mxu0
        %v1076 = vadd.f32 %v943, %v1075
        %1077 = vdwg.mxu0
        %v1078 = vand.u32 %v347, 4294901760
        %v1079 = vsub.f32 %v347, %v1078
        %v1080 = vand.u32 %v1079, 4294901760
        %1081 = vmatprep.subr.mxu0 %v1080
        %v1082 = vand.u32 %v346, 4294901760
        %v1083 = vsub.f32 %v346, %v1082
        %v1084 = vand.u32 %v1083, 4294901760
        %1085 = vmatpush1.msra.mxu0 %v1084
        %v1086 = vand.u32 %v349, 4294901760
        %v1087 = vsub.f32 %v349, %v1086
        %v1088 = vand.u32 %v1087, 4294901760
        %1089 = vmatprep.subr.mxu0 %v1088
        %v1090 = vand.u32 %v348, 4294901760
        %v1091 = vsub.f32 %v348, %v1090
        %v1092 = vand.u32 %v1091, 4294901760
        %1093 = vmatpush1.msra.mxu0 %v1092
        %v1094 = vand.u32 %v351, 4294901760
        %v1095 = vsub.f32 %v351, %v1094
        %v1096 = vand.u32 %v1095, 4294901760
        %1097 = vmatprep.subr.mxu0 %v1096
        %v1098 = vand.u32 %v350, 4294901760
        %v1099 = vsub.f32 %v350, %v1098
        %v1100 = vand.u32 %v1099, 4294901760
        %1101 = vmatpush1.msra.mxu0 %v1100
        %v1102 = vand.u32 %v353, 4294901760
        %v1103 = vsub.f32 %v353, %v1102
        %v1104 = vand.u32 %v1103, 4294901760
        %1105 = vmatprep.subr.mxu0 %v1104
        %v1106 = vand.u32 %v352, 4294901760
        %v1107 = vsub.f32 %v352, %v1106
        %v1108 = vand.u32 %v1107, 4294901760
        %1109 = vmatpush1.msra.mxu0 %v1108
        %v1110 = vand.u32 %v355, 4294901760
        %v1111 = vsub.f32 %v355, %v1110
        %v1112 = vand.u32 %v1111, 4294901760
        %1113 = vmatprep.subr.mxu0 %v1112
        %v1114 = vand.u32 %v354, 4294901760
        %v1115 = vsub.f32 %v354, %v1114
        %v1116 = vand.u32 %v1115, 4294901760
        %1117 = vmatpush1.msra.mxu0 %v1116
        %v1118 = vand.u32 %v357, 4294901760
        %v1119 = vsub.f32 %v357, %v1118
        %v1120 = vand.u32 %v1119, 4294901760
        %1121 = vmatprep.subr.mxu0 %v1120
        %v1122 = vand.u32 %v356, 4294901760
        %v1123 = vsub.f32 %v356, %v1122
        %v1124 = vand.u32 %v1123, 4294901760
        %1125 = vmatpush1.msra.mxu0 %v1124
        %v1126 = vand.u32 %v359, 4294901760
        %v1127 = vsub.f32 %v359, %v1126
        %v1128 = vand.u32 %v1127, 4294901760
        %1129 = vmatprep.subr.mxu0 %v1128
        %v1130 = vand.u32 %v358, 4294901760
        %v1131 = vsub.f32 %v358, %v1130
        %v1132 = vand.u32 %v1131, 4294901760
        %1133 = vmatpush1.msra.mxu0 %v1132
        %v1134 = vand.u32 %v361, 4294901760
        %v1135 = vsub.f32 %v361, %v1134
        %v1136 = vand.u32 %v1135, 4294901760
        %1137 = vmatprep.subr.mxu0 %v1136
        %v1138 = vand.u32 %v360, 4294901760
        %v1139 = vsub.f32 %v360, %v1138
        %v1140 = vand.u32 %v1139, 4294901760
        %1141 = vmatpush1.msra.mxu0 %v1140
        %v1142 = vand.u32 %v363, 4294901760
        %v1143 = vsub.f32 %v363, %v1142
        %v1144 = vand.u32 %v1143, 4294901760
        %1145 = vmatprep.subr.mxu0 %v1144
        %v1146 = vand.u32 %v362, 4294901760
        %v1147 = vsub.f32 %v362, %v1146
        %v1148 = vand.u32 %v1147, 4294901760
        %1149 = vmatpush1.msra.mxu0 %v1148
        %v1150 = vand.u32 %v365, 4294901760
        %v1151 = vsub.f32 %v365, %v1150
        %v1152 = vand.u32 %v1151, 4294901760
        %1153 = vmatprep.subr.mxu0 %v1152
        %v1154 = vand.u32 %v364, 4294901760
        %v1155 = vsub.f32 %v364, %v1154
        %v1156 = vand.u32 %v1155, 4294901760
        %1157 = vmatpush1.msra.mxu0 %v1156
        %v1158 = vand.u32 %v367, 4294901760
        %v1159 = vsub.f32 %v367, %v1158
        %v1160 = vand.u32 %v1159, 4294901760
        %1161 = vmatprep.subr.mxu0 %v1160
        %v1162 = vand.u32 %v366, 4294901760
        %v1163 = vsub.f32 %v366, %v1162
        %v1164 = vand.u32 %v1163, 4294901760
        %1165 = vmatpush1.msra.mxu0 %v1164
        %v1166 = vand.u32 %v369, 4294901760
        %v1167 = vsub.f32 %v369, %v1166
        %v1168 = vand.u32 %v1167, 4294901760
        %1169 = vmatprep.subr.mxu0 %v1168
        %v1170 = vand.u32 %v368, 4294901760
        %v1171 = vsub.f32 %v368, %v1170
        %v1172 = vand.u32 %v1171, 4294901760
        %1173 = vmatpush1.msra.mxu0 %v1172
        %v1174 = vand.u32 %v371, 4294901760
        %v1175 = vsub.f32 %v371, %v1174
        %v1176 = vand.u32 %v1175, 4294901760
        %1177 = vmatprep.subr.mxu0 %v1176
        %v1178 = vand.u32 %v370, 4294901760
        %v1179 = vsub.f32 %v370, %v1178
        %v1180 = vand.u32 %v1179, 4294901760
        %1181 = vmatpush1.msra.mxu0 %v1180
        %v1182 = vand.u32 %v373, 4294901760
        %v1183 = vsub.f32 %v373, %v1182
        %v1184 = vand.u32 %v1183, 4294901760
        %1185 = vmatprep.subr.mxu0 %v1184
        %v1186 = vand.u32 %v372, 4294901760
        %v1187 = vsub.f32 %v372, %v1186
        %v1188 = vand.u32 %v1187, 4294901760
        %1189 = vmatpush1.msra.mxu0 %v1188
        %v1190 = vand.u32 %v375, 4294901760
        %v1191 = vsub.f32 %v375, %v1190
        %v1192 = vand.u32 %v1191, 4294901760
        %1193 = vmatprep.subr.mxu0 %v1192
        %v1194 = vand.u32 %v374, 4294901760
        %v1195 = vsub.f32 %v374, %v1194
        %v1196 = vand.u32 %v1195, 4294901760
        %1197 = vmatpush1.msra.mxu0 %v1196
        %v1198 = vand.u32 %v377, 4294901760
        %v1199 = vsub.f32 %v377, %v1198
        %v1200 = vand.u32 %v1199, 4294901760
        %1201 = vmatprep.subr.mxu0 %v1200
        %v1202 = vand.u32 %v376, 4294901760
        %v1203 = vsub.f32 %v376, %v1202
        %v1204 = vand.u32 %v1203, 4294901760
        %1205 = vmatpush1.msra.mxu0 %v1204
        %1206 = vmatprep.subr.mxu0 0.0
        %1207 = vmatpush1.msra.mxu0 0.0
        %1208 = vmatprep.subr.mxu0 0.0
        %1209 = vmatpush1.msra.mxu0 0.0
        %1210 = vmatprep.subr.mxu0 0.0
        %1211 = vmatpush1.msra.mxu0 0.0
        %1212 = vmatprep.subr.mxu0 0.0
        %1213 = vmatpush1.msra.mxu0 0.0
        %1214 = vmatprep.subr.mxu0 0.0
        %1215 = vmatpush1.msra.mxu0 0.0
        %1216 = vmatprep.subr.mxu0 0.0
        %1217 = vmatpush1.msra.mxu0 0.0
        %1218 = vmatprep.subr.mxu0 0.0
        %1219 = vmatpush1.msra.mxu0 0.0
        %1220 = vmatprep.subr.mxu0 0.0
        %1221 = vmatpush1.msra.mxu0 0.0
        %1222 = vmatprep.subr.mxu0 0.0
        %1223 = vmatpush1.msra.mxu0 0.0
        %1224 = vmatprep.subr.mxu0 0.0
        %1225 = vmatpush1.msra.mxu0 0.0
        %1226 = vmatprep.subr.mxu0 0.0
        %1227 = vmatpush1.msra.mxu0 0.0
        %1228 = vmatprep.subr.mxu0 0.0
        %1229 = vmatpush1.msra.mxu0 0.0
        %1230 = vmatprep.subr.mxu0 0.0
        %1231 = vmatpush1.msra.mxu0 0.0
        %1232 = vmatprep.subr.mxu0 0.0
        %1233 = vmatpush1.msra.mxu0 0.0
        %1234 = vmatprep.subr.mxu0 0.0
        %1235 = vmatpush1.msra.mxu0 0.0
        %1236 = vmatprep.subr.mxu0 0.0
        %1237 = vmatpush1.msra.mxu0 0.0
        %1238 = vmatprep.mubr.f32.mxu0 0.0
        %v1239 = vand.u32 %v386, 4294901760
        %1240 = vmatmul.mubr.f32.gmra.mrb[0].mxu0 %v1239
        %v1241 = vpop.f32.mrb[0].mxu0
        %v1242 = vadd.f32 %v1047, %v1241
        %v1243 = vpop.f32.mrb[0].mxu0
        %v1244 = vadd.f32 %v1049, %v1243
        %1245 = vmatprep.mubr.f32.mxu0 0.0
        %v1246 = vand.u32 %v387, 4294901760
        %1247 = vmatmul.mubr.f32.gmra.mrb[0].mxu0 %v1246
        %v1248 = vpop.f32.mrb[0].mxu0
        %v1249 = vadd.f32 %v1056, %v1248
        %v1250 = vpop.f32.mrb[0].mxu0
        %v1251 = vadd.f32 %v1058, %v1250
        %1252 = vmatprep.mubr.f32.mxu0 0.0
        %v1253 = vand.u32 %v388, 4294901760
        %1254 = vmatmul.mubr.f32.gmra.mrb[0].mxu0 %v1253
        %v1255 = vpop.f32.mrb[0].mxu0
        %v1256 = vadd.f32 %v1065, %v1255
        %v1257 = vpop.f32.mrb[0].mxu0
        %v1258 = vadd.f32 %v1067, %v1257
        %1259 = vmatprep.mubr.f32.mxu0 0.0
        %v1260 = vand.u32 %v389, 4294901760
        %1261 = vmatmul.mubr.f32.gmra.mrb[0].mxu0 %v1260
        %v1262 = vpop.f32.mrb[0].mxu0
        %v1263 = vadd.f32 %v1074, %v1262
        %v1264 = vpop.f32.mrb[0].mxu0
        %v1265 = vadd.f32 %v1076, %v1264
        %1266 = vdwg.mxu0
        %v1267 = vand.u32 %v347, 4294901760
        %1268 = vmatprep.subr.mxu0 %v1267
        %v1269 = vand.u32 %v346, 4294901760
        %1270 = vmatpush1.msra.mxu0 %v1269
        %v1271 = vand.u32 %v349, 4294901760
        %1272 = vmatprep.subr.mxu0 %v1271
        %v1273 = vand.u32 %v348, 4294901760
        %1274 = vmatpush1.msra.mxu0 %v1273
        %v1275 = vand.u32 %v351, 4294901760
        %1276 = vmatprep.subr.mxu0 %v1275
        %v1277 = vand.u32 %v350, 4294901760
        %1278 = vmatpush1.msra.mxu0 %v1277
        %v1279 = vand.u32 %v353, 4294901760
        %1280 = vmatprep.subr.mxu0 %v1279
        %v1281 = vand.u32 %v352, 4294901760
        %1282 = vmatpush1.msra.mxu0 %v1281
        %v1283 = vand.u32 %v355, 4294901760
        %1284 = vmatprep.subr.mxu0 %v1283
        %v1285 = vand.u32 %v354, 4294901760
        %1286 = vmatpush1.msra.mxu0 %v1285
        %v1287 = vand.u32 %v357, 4294901760
        %1288 = vmatprep.subr.mxu0 %v1287
        %v1289 = vand.u32 %v356, 4294901760
        %1290 = vmatpush1.msra.mxu0 %v1289
        %v1291 = vand.u32 %v359, 4294901760
        %1292 = vmatprep.subr.mxu0 %v1291
        %v1293 = vand.u32 %v358, 4294901760
        %1294 = vmatpush1.msra.mxu0 %v1293
        %v1295 = vand.u32 %v361, 4294901760
        %1296 = vmatprep.subr.mxu0 %v1295
        %v1297 = vand.u32 %v360, 4294901760
        %1298 = vmatpush1.msra.mxu0 %v1297
        %v1299 = vand.u32 %v363, 4294901760
        %1300 = vmatprep.subr.mxu0 %v1299
        %v1301 = vand.u32 %v362, 4294901760
        %1302 = vmatpush1.msra.mxu0 %v1301
        %v1303 = vand.u32 %v365, 4294901760
        %1304 = vmatprep.subr.mxu0 %v1303
        %v1305 = vand.u32 %v364, 4294901760
        %1306 = vmatpush1.msra.mxu0 %v1305
        %v1307 = vand.u32 %v367, 4294901760
        %1308 = vmatprep.subr.mxu0 %v1307
        %v1309 = vand.u32 %v366, 4294901760
        %1310 = vmatpush1.msra.mxu0 %v1309
        %v1311 = vand.u32 %v369, 4294901760
        %1312 = vmatprep.subr.mxu0 %v1311
        %v1313 = vand.u32 %v368, 4294901760
        %1314 = vmatpush1.msra.mxu0 %v1313
        %v1315 = vand.u32 %v371, 4294901760
        %1316 = vmatprep.subr.mxu0 %v1315
        %v1317 = vand.u32 %v370, 4294901760
        %1318 = vmatpush1.msra.mxu0 %v1317
        %v1319 = vand.u32 %v373, 4294901760
        %1320 = vmatprep.subr.mxu0 %v1319
        %v1321 = vand.u32 %v372, 4294901760
        %1322 = vmatpush1.msra.mxu0 %v1321
        %v1323 = vand.u32 %v375, 4294901760
        %1324 = vmatprep.subr.mxu0 %v1323
        %v1325 = vand.u32 %v374, 4294901760
        %1326 = vmatpush1.msra.mxu0 %v1325
        %v1327 = vand.u32 %v377, 4294901760
        %1328 = vmatprep.subr.mxu0 %v1327
        %v1329 = vand.u32 %v376, 4294901760
        %1330 = vmatpush1.msra.mxu0 %v1329
        %1331 = vmatprep.subr.mxu0 0.0
        %1332 = vmatpush1.msra.mxu0 0.0
        %1333 = vmatprep.subr.mxu0 0.0
        %1334 = vmatpush1.msra.mxu0 0.0
        %1335 = vmatprep.subr.mxu0 0.0
        %1336 = vmatpush1.msra.mxu0 0.0
        %1337 = vmatprep.subr.mxu0 0.0
        %1338 = vmatpush1.msra.mxu0 0.0
        %1339 = vmatprep.subr.mxu0 0.0
        %1340 = vmatpush1.msra.mxu0 0.0
        %1341 = vmatprep.subr.mxu0 0.0
        %1342 = vmatpush1.msra.mxu0 0.0
        %1343 = vmatprep.subr.mxu0 0.0
        %1344 = vmatpush1.msra.mxu0 0.0
        %1345 = vmatprep.subr.mxu0 0.0
        %1346 = vmatpush1.msra.mxu0 0.0
        %1347 = vmatprep.subr.mxu0 0.0
        %1348 = vmatpush1.msra.mxu0 0.0
        %1349 = vmatprep.subr.mxu0 0.0
        %1350 = vmatpush1.msra.mxu0 0.0
        %1351 = vmatprep.subr.mxu0 0.0
        %1352 = vmatpush1.msra.mxu0 0.0
        %1353 = vmatprep.subr.mxu0 0.0
        %1354 = vmatpush1.msra.mxu0 0.0
        %1355 = vmatprep.subr.mxu0 0.0
        %1356 = vmatpush1.msra.mxu0 0.0
        %1357 = vmatprep.subr.mxu0 0.0
        %1358 = vmatpush1.msra.mxu0 0.0
        %1359 = vmatprep.subr.mxu0 0.0
        %1360 = vmatpush1.msra.mxu0 0.0
        %1361 = vmatprep.subr.mxu0 0.0
        %1362 = vmatpush1.msra.mxu0 0.0
        %1363 = vmatprep.mubr.f32.mxu0 0.0
        %v1364 = vand.u32 %v386, 4294901760
        %1365 = vmatmul.mubr.f32.gmra.mrb[0].mxu0 %v1364
        %v1366 = vpop.f32.mrb[0].mxu0
        %v1367 = vadd.f32 %v1242, %v1366
        %v1368 = vpop.f32.mrb[0].mxu0
        %v1369 = vadd.f32 %v1244, %v1368
        %1370 = vmatprep.mubr.f32.mxu0 0.0
        %v1371 = vand.u32 %v387, 4294901760
        %1372 = vmatmul.mubr.f32.gmra.mrb[0].mxu0 %v1371
        %v1373 = vpop.f32.mrb[0].mxu0
        %v1374 = vadd.f32 %v1249, %v1373
        %v1375 = vpop.f32.mrb[0].mxu0
        %v1376 = vadd.f32 %v1251, %v1375
        %1377 = vmatprep.mubr.f32.mxu0 0.0
        %v1378 = vand.u32 %v388, 4294901760
        %1379 = vmatmul.mubr.f32.gmra.mrb[0].mxu0 %v1378
        %v1380 = vpop.f32.mrb[0].mxu0
        %v1381 = vadd.f32 %v1256, %v1380
        %v1382 = vpop.f32.mrb[0].mxu0
        %v1383 = vadd.f32 %v1258, %v1382
        %1384 = vmatprep.mubr.f32.mxu0 0.0
        %v1385 = vand.u32 %v389, 4294901760
        %1386 = vmatmul.mubr.f32.gmra.mrb[0].mxu0 %v1385
        %v1387 = vpop.f32.mrb[0].mxu0
        %v1388 = vadd.f32 %v1263, %v1387
        %v1389 = vpop.f32.mrb[0].mxu0
        %v1390 = vadd.f32 %v1265, %v1389
        %1391 = vdwg.mxu0
        %v1392 = vadd.f32 %v378, %v1367
        %v1393 = vadd.f32 %v379, %v1369
        %v1394 = vadd.f32 %v380, %v1374
        %v1395 = vadd.f32 %v381, %v1376
        %v1396 = vadd.f32 %v382, %v1381
        %v1397 = vadd.f32 %v383, %v1383
        %v1398 = vadd.f32 %v384, %v1388
        %v1399 = vadd.f32 %v385, %v1390
        %1400 = vst [vmem:[#allocation2] sm:$0xff] %v1392
        %1401 = vst [vmem:[#allocation2 + $0x8] sm:$0xff] %v1393
        %1402 = vst [vmem:[#allocation2 + $0x10] sm:$0xff] %v1394
        %1403 = vst [vmem:[#allocation2 + $0x18] sm:$0xff] %v1395
        %1404 = vst [vmem:[#allocation2 + $0x20] sm:$0xff] %v1396
        %1405 = vst [vmem:[#allocation2 + $0x28] sm:$0xff] %v1397
        %1406 = vst [vmem:[#allocation2 + $0x30] sm:$0xff] %v1398
        %1407 = vst [vmem:[#allocation2 + $0x38] sm:$0xff] %v1399
        // Predicated region
        $region33: #{tpu_custom_call.1} parent=27 // pred_check
          %p1408 = pneg %p183
        $region34: #{tpu_custom_call.1} parent=27 // pred_check_branch
          %1410 = sbr.rel (%p1408) target = $region36
        $region35: #{tpu_custom_call.1} parent=27 // pred_region
          %v1411 = vld [vmem:[#allocation2] sm:$0xff]
          %v1412 = vld [vmem:[#allocation2 + $0x8] sm:$0xff]
          %v1413 = vld [vmem:[#allocation2 + $0x10] sm:$0xff]
          %v1414 = vld [vmem:[#allocation2 + $0x18] sm:$0xff]
          %v1415 = vld [vmem:[#allocation2 + $0x20] sm:$0xff]
          %v1416 = vld [vmem:[#allocation2 + $0x28] sm:$0xff]
          %v1417 = vld [vmem:[#allocation2 + $0x30] sm:$0xff]
          %v1418 = vld [vmem:[#allocation2 + $0x38] sm:$0xff]
          %1419 = vst [vmem:[%s171] sm:$0xff] %v1411
          %1420 = vst [vmem:[%s171 + $0x8] sm:$0xff] %v1412
          %1421 = vst [vmem:[%s171 + $0x10] sm:$0xff] %v1413
          %1422 = vst [vmem:[%s171 + $0x18] sm:$0xff] %v1414
          %1423 = vst [vmem:[%s171 + $0x20] sm:$0xff] %v1415
          %1424 = vst [vmem:[%s171 + $0x28] sm:$0xff] %v1416
          %1425 = vst [vmem:[%s171 + $0x30] sm:$0xff] %v1417
          %1426 = vst [vmem:[%s171 + $0x38] sm:$0xff] %v1418
        $region36: #{tpu_custom_call.1} parent=27 // pred_fallthru
          _
        %s1427 = sand.u32 %s97, 1
        %s1428 = scalar_lea.sflag [#allocation4], %s1427
        %s1429 = sand.u32 %s97, 1
        %s1430 = smul.addr %s1429, 64
        %s1431 = scalar_lea.vmem [#allocation3], %s1430
        // Predicated region
        $region37: #{tpu_custom_call.1} parent=27 // pred_check
          %p1432 = pneg %p107
        $region38: #{tpu_custom_call.1} parent=27 // pred_check_branch
          %1434 = sbr.rel (%p1432) target = $region40
        $region39: #{tpu_custom_call.1} parent=27 // pred_region
          %s1435 = smul.u32 2, %s22
          %s1437 = ssub.s32 1024, 1024
          %1438 = vsyncadd %s1428, %s1437
          %s1439 = smul.addr %s21, 8
          %s1440 = sadd.s32 %s1435, %s1439
          %s1441 = smul.addr %s1440, 128
          %s1442 = scalar_lea.hbm %s2, %s1441
          %s1443 = sshll.u32 %s1431, 4
          %s1444 = int_to_ptr.vmem [resolvable:$true] %s1443
          %1449 = dma.vmem_to_hbm [thread:$0]  %s1444, 1024, %s1442, %s1428, 256, 256, 16
        $region40: #{tpu_custom_call.1} parent=27 // pred_fallthru
          _
      $region28: #{tpu_custom_call.1} parent=5 // pred_fallthru
        _
      %p1450 = scmp.le.s32.totalorder 2, %s11
      // Predicated region
      $region41: #{tpu_custom_call.1} parent=5 // pred_check
        %p1451 = pneg %p1450
      $region42: #{tpu_custom_call.1} parent=5 // pred_check_branch
        %1453 = sbr.rel (%p1451) target = $region44
      $region43: #{tpu_custom_call.1} parent=5 // pred_region
        %s1454 = ssub.s32 %s11, 2
        // Predicated region
        $region45: #{tpu_custom_call.1} parent=43 // pred_check
          %p1455 = pneg %p113
        $region46: #{tpu_custom_call.1} parent=43 // pred_check_branch
          %1457 = sbr.rel (%p1455) target = $region48
        $region47: #{tpu_custom_call.1} parent=43 // pred_region
          %s1458 = sand.u32 %s98, 1
          %s1459 = scalar_lea.sflag [#allocation4], %s1458
          %s1460 = sand.u32 %s98, 1
          %s1461 = smul.addr %s1460, 64
          %s1462 = scalar_lea.vmem [#allocation3], %s1461
          %1463 = dma.done %s1459, 1024
        $region48: #{tpu_custom_call.1} parent=43 // pred_fallthru
          _
      $region44: #{tpu_custom_call.1} parent=5 // pred_fallthru
        _
    $region6: #{tpu_custom_call.1} parent=1 // loop_footer
      %s15 = sadd.s32 1, %s11
    $region7: #{tpu_custom_call.1} parent=1 // loop_footer_branch
      %10 = sbr.rel target = $region3
    $region8: #{tpu_custom_call.1} parent=1 // loop_exit
      _
    %1464 = vsyncpa [#allocation4], 1
    %s1465 = scalar_lea.sflag [#allocation4], 1
    %1466 = vsyncpa %s1465, 1

</llo_original>
